<compile_context>
chip_gen: v6e
topology: v6e:2x2x1
jax: 0.10.0
libtpu: 0.0.40
codegen_flags: <defaults>
</compile_context>

<pallas_src>
import functools

import jax
import jax.numpy as jnp
import numpy as np
from jax.experimental import pallas as pl
from jax.experimental.pallas import tpu as pltpu


# ----------------------------------------------------------------------------- kernel
def _window_attention_kernel(
    x_ref,          # (TB, N, C)     TB windows' tokens
    wqkv_ref,       # (C, 3C)        qkv weight, pre-transposed, scale folded into Q cols
    bqkv_ref,       # (1, 3C)        qkv bias, scale folded into Q part
    wprojh_ref,     # (nH, hd, C)    per-head output-projection blocks
    bproj_ref,      # (1, C)         proj bias
    bias_ref,       # (nH, N, N)     relative position bias (pre-gathered)
    out_x_ref,      # (TB, N, C)
    out_attn_ref,   # (TB, N)        row 0 of head-mean attention, per window
    *,
    num_heads: int,
):
    TB, N, C = x_ref.shape
    nH = num_heads
    hd = C // nH
    mm_dtype = x_ref.dtype          # bf16 inputs -> bf16 MXU matmuls (f32 accumulation)

    xf = x_ref[...].reshape(TB * N, C)          # leading-dim merge: layout-preserving

    # Fused QKV projection: one (TB*N, C) x (C, 3C) MXU matmul for the whole block.
    qkv = jnp.dot(xf, wqkv_ref[...].astype(mm_dtype),
                  preferred_element_type=jnp.float32)
    qkv = qkv + bqkv_ref[...].astype(jnp.float32)           # (TB*N, 3C), f32

    y_acc = jnp.zeros((TB * N, C), jnp.float32)             # proj accumulator (no concat)
    row0_acc = jnp.zeros((TB, N), jnp.float32)              # head-mean attention, row 0 only

    # Static unroll over heads; every per-head op is batched over the TB windows.
    for h in range(nH):
        q = qkv[:, 0 * C + h * hd:0 * C + (h + 1) * hd]     # (TB*N, hd)
        k = qkv[:, 1 * C + h * hd:1 * C + (h + 1) * hd]
        v = qkv[:, 2 * C + h * hd:2 * C + (h + 1) * hd]
        q = q.reshape(TB, N, hd).astype(mm_dtype)
        k = k.reshape(TB, N, hd).astype(mm_dtype)
        v = v.reshape(TB, N, hd).astype(mm_dtype)

        # scores, batched over windows (scale already folded into Q params)
        s = jnp.einsum("bnd,bmd->bnm", q, k,
                       preferred_element_type=jnp.float32)          # (TB, N, N)
        s = s + bias_ref[h].astype(jnp.float32)[None]

        # softmax along the key axis, f32
        s = s - jnp.max(s, axis=-1, keepdims=True)
        p = jnp.exp(s)
        p = p / jnp.sum(p, axis=-1, keepdims=True)

        # only row 0 of the head-mean attention is ever needed
        row0_acc = row0_acc + p[:, 0, :]

        # context + per-head slice of the output projection (== concat(ctx_h) @ Wproj)
        ctx = jnp.einsum("bnm,bmd->bnd", p.astype(mm_dtype), v,
                         preferred_element_type=jnp.float32)        # (TB, N, hd)
        y_acc = y_acc + jnp.dot(ctx.reshape(TB * N, hd).astype(mm_dtype),
                                wprojh_ref[h].astype(mm_dtype),
                                preferred_element_type=jnp.float32)

    y = y_acc + bproj_ref[...].astype(jnp.float32)
    out_x_ref[...] = y.reshape(TB, N, C).astype(out_x_ref.dtype)
    out_attn_ref[...] = (row0_acc * (1.0 / nH)).astype(out_attn_ref.dtype)


# ---------------------------------------------------------------------------- wrapper
def prepare_window_attention_params(wqkv_t, bqkv, wproj_t, bproj, *, dim, num_heads):
    """One-time host-side parameter prep (constant transforms, not per-call):
       - fold 1/sqrt(head_dim) into the Q columns of the QKV weight/bias,
       - reshape the proj weight into per-head (nH, hd, C) blocks,
       - give biases a 2-D (1, X) layout for the kernel."""
    hd = dim // num_heads
    scale = hd ** (-0.5)
    wqkv_t = wqkv_t.at[:, :dim].multiply(scale)
    bqkv = bqkv.at[:dim].multiply(scale)
    wproj_heads = wproj_t.reshape(num_heads, hd, dim)
    return wqkv_t, bqkv.reshape(1, 3 * dim), wproj_heads, bproj.reshape(1, dim)


def window_attention(x, wqkv_t, bqkv2d, wproj_heads, bproj2d, rel_bias, *,
                     num_heads, windows_per_block=8):
    """x: (B_, N, C); params from prepare_window_attention_params; rel_bias: (nH, N, N).
    Returns (x_out (B_, N, C), attn_value (B_, N))."""
    B_, N, C = x.shape
    nH = num_heads

    tb = int(max(1, min(windows_per_block, B_)))
    if tb < B_:
        # (tb, N) attention block puts tb in the sublane slot -> keep it 8-aligned
        # whenever the block is not the full batch.
        tb = max(8, (tb // 8) * 8)
    nblk = -(-B_ // tb)                      # ceil
    Bp = nblk * tb
    if Bp != B_:                             # pad window-batch to a multiple of TB
        x = jnp.pad(x, ((0, Bp - B_), (0, 0), (0, 0)))

    kernel = functools.partial(_window_attention_kernel, num_heads=nH)

    out_x, out_attn = pl.pallas_call(
        kernel,
        grid=(nblk,),
        in_specs=[
            pl.BlockSpec((tb, N, C), lambda b: (b, 0, 0)),        # x: TB windows per step
            pl.BlockSpec((C, 3 * C), lambda b: (0, 0)),           # qkv weight (resident)
            pl.BlockSpec((1, 3 * C), lambda b: (0, 0)),           # qkv bias
            pl.BlockSpec((nH, C // nH, C), lambda b: (0, 0, 0)),  # per-head proj weight
            pl.BlockSpec((1, C), lambda b: (0, 0)),               # proj bias
            pl.BlockSpec((nH, N, N), lambda b: (0, 0, 0)),        # relative position bias
        ],
        out_specs=[
            pl.BlockSpec((tb, N, C), lambda b: (b, 0, 0)),
            pl.BlockSpec((tb, N), lambda b: (b, 0)),
        ],
        out_shape=[
            jax.ShapeDtypeStruct((Bp, N, C), x.dtype),
            jax.ShapeDtypeStruct((Bp, N), jnp.float32),
        ],
        compiler_params=pltpu.CompilerParams(
            dimension_semantics=("parallel",)),
    )(x, wqkv_t, bqkv2d, wproj_heads, bproj2d, rel_bias)

    return out_x[:B_], out_attn[:B_]


# --------------------------------------------------------------------------- glue/init
def make_relative_position_index(window_size):
    """Mirror of the torch buffer construction (numpy, static)."""
    Wh, Ww = window_size
    coords = np.stack(np.meshgrid(np.arange(Wh), np.arange(Ww), indexing="ij"))
    coords_flatten = coords.reshape(2, -1)                                   # (2, N)
    rel = coords_flatten[:, :, None] - coords_flatten[:, None, :]            # (2, N, N)
    rel = rel.transpose(1, 2, 0).copy()                                      # (N, N, 2)
    rel[:, :, 0] += Wh - 1
    rel[:, :, 1] += Ww - 1
    rel[:, :, 0] *= 2 * Ww - 1
    return rel.sum(-1)                                                       # (N, N)


def reference_forward(x, wqkv_t, bqkv, wproj_t, bproj, rel_bias, num_heads):
    """Pure-JAX replica of the PyTorch forward (mask=None), raw (unfolded) params."""
    B_, N, C = x.shape
    hd = C // num_heads
    scale = hd ** (-0.5)
    qkv = (x @ wqkv_t + bqkv).reshape(B_, N, 3, num_heads, hd).transpose(2, 0, 3, 1, 4)
    q, k, v = qkv[0] * scale, qkv[1], qkv[2]
    attn = jnp.einsum("bhnd,bhmd->bhnm", q, k) + rel_bias[None]
    attn = jax.nn.softmax(attn, axis=-1)
    attn_value = attn.mean(axis=1)[:, 0, :]
    xo = jnp.einsum("bhnm,bhmd->bhnd", attn, v).transpose(0, 2, 1, 3).reshape(B_, N, C)
    xo = xo @ wproj_t + bproj
    return xo, attn_value


if __name__ == "__main__":
    # Small shapes consistent with the module: dim=32, window 4x4 -> N=16, 4 heads.
    dim = 32
    window_size = (4, 4)
    num_heads = 4
    N = window_size[0] * window_size[1]

    key = jax.random.PRNGKey(0)
    k_x, k_x2, k_tab, k_wqkv, k_wproj = jax.random.split(key, 5)

    # Deterministic parameter init (shapes from __init__; synthetic, not a checkpoint).
    num_rel = (2 * window_size[0] - 1) * (2 * window_size[1] - 1)
    rel_table = 0.02 * jax.random.truncated_normal(
        k_tab, -2.0, 2.0, (num_rel, num_heads), dtype=jnp.float32)
    wqkv_t = 0.02 * jax.random.normal(k_wqkv, (dim, 3 * dim), dtype=jnp.float32)  # (in, out)
    bqkv = jnp.zeros((3 * dim,), jnp.float32)
    wproj_t = 0.02 * jax.random.normal(k_wproj, (dim, dim), dtype=jnp.float32)    # (in, out)
    bproj = jnp.zeros((dim,), jnp.float32)

    # Gather the relative-position bias once (glue), giving (nH, N, N).
    rel_index = jnp.asarray(make_relative_position_index(window_size))           # (N, N)
    rel_bias = rel_table[rel_index.reshape(-1)].reshape(N, N, num_heads)
    rel_bias = jnp.transpose(rel_bias, (2, 0, 1))                                 # (nH, N, N)

    # One-time parameter prep for the kernel (scale folding + per-head proj blocks).
    wqkv_p, bqkv_p, wprojh_p, bproj_p = prepare_window_attention_params(
        wqkv_t, bqkv, wproj_t, bproj, dim=dim, num_heads=num_heads)

    # --- case 1: tiny batch (B_=2) ------------------------------------------------
    B1 = 2
    x1 = jax.random.normal(k_x, (B1, N, dim), dtype=jnp.float32)
    out_x1, attn1 = window_attention(
        x1, wqkv_p, bqkv_p, wprojh_p, bproj_p, rel_bias, num_heads=num_heads)
    jax.block_until_ready((out_x1, attn1))
    ref_x1, ref_a1 = reference_forward(x1, wqkv_t, bqkv, wproj_t, bproj, rel_bias, num_heads)
    np.testing.assert_allclose(np.asarray(out_x1), np.asarray(ref_x1), rtol=1e-4, atol=1e-4)
    np.testing.assert_allclose(np.asarray(attn1), np.asarray(ref_a1), rtol=1e-4, atol=1e-4)

    # --- case 2: exercises window batching (TB=8) + batch padding (B_=10 -> 16) ----
    B2 = 10
    x2 = jax.random.normal(k_x2, (B2, N, dim), dtype=jnp.float32)
    out_x2, attn2 = window_attention(
        x2, wqkv_p, bqkv_p, wprojh_p, bproj_p, rel_bias,
        num_heads=num_heads, windows_per_block=8)
    jax.block_until_ready((out_x2, attn2))
    ref_x2, ref_a2 = reference_forward(x2, wqkv_t, bqkv, wproj_t, bproj, rel_bias, num_heads)
    np.testing.assert_allclose(np.asarray(out_x2), np.asarray(ref_x2), rtol=1e-4, atol=1e-4)
    np.testing.assert_allclose(np.asarray(attn2), np.asarray(ref_a2), rtol=1e-4, atol=1e-4)

    print("KERNEL_OK")
</pallas_src>

<mosaic_0001>
module attributes {stable_mosaic.version = 11 : i64} {
  func.func @_window_attention_kernel(%arg0: i32, %arg1: memref<2x16x32xf32, #tpu.memory_space<vmem>>, %arg2: memref<32x96xf32, #tpu.memory_space<vmem>>, %arg3: memref<1x96xf32, #tpu.memory_space<vmem>>, %arg4: memref<4x8x32xf32, #tpu.memory_space<vmem>>, %arg5: memref<1x32xf32, #tpu.memory_space<vmem>>, %arg6: memref<4x16x16xf32, #tpu.memory_space<vmem>>, %arg7: memref<2x16x32xf32, #tpu.memory_space<vmem>>, %arg8: memref<2x16xf32, #tpu.memory_space<vmem>>) attributes {dimension_semantics = [#tpu.dimension_semantics<parallel>], iteration_bounds = array<i64: 1>, scalar_prefetch = 0 : i64, scratch_operands = 0 : i64, tpu.core_type = #tpu.core_type<tc>, window_params = [{transform_indices = @transform_0, window_bounds = array<i64: 2, 16, 32>}, {pipeline_mode = #tpu.pipeline_mode<synchronous>, transform_indices = @transform_1, window_bounds = array<i64: 32, 96>}, {pipeline_mode = #tpu.pipeline_mode<synchronous>, transform_indices = @transform_2, window_bounds = array<i64: 1, 96>}, {pipeline_mode = #tpu.pipeline_mode<synchronous>, transform_indices = @transform_3, window_bounds = array<i64: 4, 8, 32>}, {pipeline_mode = #tpu.pipeline_mode<synchronous>, transform_indices = @transform_4, window_bounds = array<i64: 1, 32>}, {pipeline_mode = #tpu.pipeline_mode<synchronous>, transform_indices = @transform_5, window_bounds = array<i64: 4, 16, 16>}, {transform_indices = @transform_6, window_bounds = array<i64: 2, 16, 32>}, {transform_indices = @transform_7, window_bounds = array<i64: 2, 16>}]} {
    %c0 = arith.constant 0 : index
    %c0_0 = arith.constant 0 : index
    %c0_1 = arith.constant 0 : index
    %0 = vector.load %arg1[%c0, %c0_0, %c0_1] : memref<2x16x32xf32, #tpu.memory_space<vmem>>, vector<2x16x32xf32>
    %1 = vector.shape_cast %0 : vector<2x16x32xf32> to vector<32x32xf32>
    %c0_2 = arith.constant 0 : index
    %c0_3 = arith.constant 0 : index
    %2 = vector.load %arg2[%c0_2, %c0_3] : memref<32x96xf32, #tpu.memory_space<vmem>>, vector<32x96xf32>
    %cst = arith.constant dense<0.000000e+00> : vector<32x96xf32>
    %3 = tpu.matmul %1, %2, %cst {dimension_numbers = #tpu.dot_dimension_numbers<[1], [0], [0], [1], [0, 0, 1, 1], [], []>} : vector<32x32xf32>, vector<32x96xf32>, vector<32x96xf32> -> vector<32x96xf32>
    %c0_4 = arith.constant 0 : index
    %c0_5 = arith.constant 0 : index
    %4 = vector.load %arg3[%c0_4, %c0_5] : memref<1x96xf32, #tpu.memory_space<vmem>>, vector<1x96xf32>
    %5 = vector.broadcast %4 : vector<1x96xf32> to vector<32x96xf32>
    %6 = arith.addf %3, %5 : vector<32x96xf32>
    %cst_6 = arith.constant 0.000000e+00 : f32
    %7 = vector.broadcast %cst_6 : f32 to vector<32x32xf32>
    %cst_7 = arith.constant 0.000000e+00 : f32
    %8 = vector.broadcast %cst_7 : f32 to vector<2x16xf32>
    %9 = vector.extract_strided_slice %6 {offsets = [0, 0], sizes = [32, 8], strides = [1, 1]} : vector<32x96xf32> to vector<32x8xf32>
    %10 = vector.extract_strided_slice %6 {offsets = [0, 32], sizes = [32, 8], strides = [1, 1]} : vector<32x96xf32> to vector<32x8xf32>
    %11 = vector.extract_strided_slice %6 {offsets = [0, 64], sizes = [32, 8], strides = [1, 1]} : vector<32x96xf32> to vector<32x8xf32>
    %12 = vector.shape_cast %9 : vector<32x8xf32> to vector<2x16x8xf32>
    %13 = vector.shape_cast %10 : vector<32x8xf32> to vector<2x16x8xf32>
    %14 = vector.shape_cast %11 : vector<32x8xf32> to vector<2x16x8xf32>
    "tpu.trace_start"() <{level = 10 : i32, message = "bnd,bmd->bnm"}> : () -> ()
    %cst_8 = arith.constant dense<0.000000e+00> : vector<2x16x16xf32>
    %15 = tpu.matmul %12, %13, %cst_8 {dimension_numbers = #tpu.dot_dimension_numbers<[2], [2], [1], [1], [0, 0, 0, 1, 1, 1], [0], [0]>} : vector<2x16x8xf32>, vector<2x16x8xf32>, vector<2x16x16xf32> -> vector<2x16x16xf32>
    "tpu.trace_stop"() : () -> ()
    %c0_9 = arith.constant 0 : index
    %c0_10 = arith.constant 0 : index
    %c0_11 = arith.constant 0 : index
    %16 = vector.load %arg6[%c0_9, %c0_10, %c0_11] : memref<4x16x16xf32, #tpu.memory_space<vmem>>, vector<1x16x16xf32>
    %17 = vector.shape_cast %16 : vector<1x16x16xf32> to vector<16x16xf32>
    %18 = vector.shape_cast %17 : vector<16x16xf32> to vector<1x16x16xf32>
    %19 = vector.broadcast %18 : vector<1x16x16xf32> to vector<2x16x16xf32>
    %20 = arith.addf %15, %19 : vector<2x16x16xf32>
    %cst_12 = arith.constant dense<0xFF800000> : vector<2x16xf32>
    %21 = vector.multi_reduction <maximumf>, %20, %cst_12 [2] : vector<2x16x16xf32> to vector<2x16xf32>
    %22 = vector.shape_cast %21 : vector<2x16xf32> to vector<2x16x1xf32>
    %23 = vector.broadcast %22 : vector<2x16x1xf32> to vector<2x16x16xf32>
    %24 = arith.subf %20, %23 : vector<2x16x16xf32>
    %25 = math.exp %24 : vector<2x16x16xf32>
    %cst_13 = arith.constant dense<0.000000e+00> : vector<2x16xf32>
    %26 = vector.multi_reduction <add>, %25, %cst_13 [2] : vector<2x16x16xf32> to vector<2x16xf32>
    %27 = vector.shape_cast %26 : vector<2x16xf32> to vector<2x16x1xf32>
    %28 = vector.broadcast %27 : vector<2x16x1xf32> to vector<2x16x16xf32>
    %29 = arith.divf %25, %28 : vector<2x16x16xf32>
    %30 = vector.extract_strided_slice %29 {offsets = [0, 0, 0], sizes = [2, 1, 16], strides = [1, 1, 1]} : vector<2x16x16xf32> to vector<2x1x16xf32>
    %31 = vector.shape_cast %30 : vector<2x1x16xf32> to vector<2x16xf32>
    %32 = arith.addf %8, %31 : vector<2x16xf32>
    "tpu.trace_start"() <{level = 10 : i32, message = "bnm,bmd->bnd"}> : () -> ()
    %cst_14 = arith.constant dense<0.000000e+00> : vector<2x16x8xf32>
    %33 = tpu.matmul %29, %14, %cst_14 {dimension_numbers = #tpu.dot_dimension_numbers<[2], [1], [1], [2], [0, 0, 0, 1, 1, 2], [0], [0]>} : vector<2x16x16xf32>, vector<2x16x8xf32>, vector<2x16x8xf32> -> vector<2x16x8xf32>
    "tpu.trace_stop"() : () -> ()
    %34 = vector.shape_cast %33 : vector<2x16x8xf32> to vector<32x8xf32>
    %c0_15 = arith.constant 0 : index
    %c0_16 = arith.constant 0 : index
    %c0_17 = arith.constant 0 : index
    %35 = vector.load %arg4[%c0_15, %c0_16, %c0_17] : memref<4x8x32xf32, #tpu.memory_space<vmem>>, vector<1x8x32xf32>
    %36 = vector.shape_cast %35 : vector<1x8x32xf32> to vector<8x32xf32>
    %cst_18 = arith.constant dense<0.000000e+00> : vector<32x32xf32>
    %37 = tpu.matmul %34, %36, %cst_18 {dimension_numbers = #tpu.dot_dimension_numbers<[1], [0], [0], [1], [0, 0, 1, 1], [], []>} : vector<32x8xf32>, vector<8x32xf32>, vector<32x32xf32> -> vector<32x32xf32>
    %38 = arith.addf %7, %37 : vector<32x32xf32>
    %39 = vector.extract_strided_slice %6 {offsets = [0, 8], sizes = [32, 8], strides = [1, 1]} : vector<32x96xf32> to vector<32x8xf32>
    %40 = vector.extract_strided_slice %6 {offsets = [0, 40], sizes = [32, 8], strides = [1, 1]} : vector<32x96xf32> to vector<32x8xf32>
    %41 = vector.extract_strided_slice %6 {offsets = [0, 72], sizes = [32, 8], strides = [1, 1]} : vector<32x96xf32> to vector<32x8xf32>
    %42 = vector.shape_cast %39 : vector<32x8xf32> to vector<2x16x8xf32>
    %43 = vector.shape_cast %40 : vector<32x8xf32> to vector<2x16x8xf32>
    %44 = vector.shape_cast %41 : vector<32x8xf32> to vector<2x16x8xf32>
    "tpu.trace_start"() <{level = 10 : i32, message = "bnd,bmd->bnm"}> : () -> ()
    %cst_19 = arith.constant dense<0.000000e+00> : vector<2x16x16xf32>
    %45 = tpu.matmul %42, %43, %cst_19 {dimension_numbers = #tpu.dot_dimension_numbers<[2], [2], [1], [1], [0, 0, 0, 1, 1, 1], [0], [0]>} : vector<2x16x8xf32>, vector<2x16x8xf32>, vector<2x16x16xf32> -> vector<2x16x16xf32>
    "tpu.trace_stop"() : () -> ()
    %c1 = arith.constant 1 : index
    %c0_20 = arith.constant 0 : index
    %c0_21 = arith.constant 0 : index
    %46 = vector.load %arg6[%c1, %c0_20, %c0_21] : memref<4x16x16xf32, #tpu.memory_space<vmem>>, vector<1x16x16xf32>
    %47 = vector.shape_cast %46 : vector<1x16x16xf32> to vector<16x16xf32>
    %48 = vector.shape_cast %47 : vector<16x16xf32> to vector<1x16x16xf32>
    %49 = vector.broadcast %48 : vector<1x16x16xf32> to vector<2x16x16xf32>
    %50 = arith.addf %45, %49 : vector<2x16x16xf32>
    %cst_22 = arith.constant dense<0xFF800000> : vector<2x16xf32>
    %51 = vector.multi_reduction <maximumf>, %50, %cst_22 [2] : vector<2x16x16xf32> to vector<2x16xf32>
    %52 = vector.shape_cast %51 : vector<2x16xf32> to vector<2x16x1xf32>
    %53 = vector.broadcast %52 : vector<2x16x1xf32> to vector<2x16x16xf32>
    %54 = arith.subf %50, %53 : vector<2x16x16xf32>
    %55 = math.exp %54 : vector<2x16x16xf32>
    %cst_23 = arith.constant dense<0.000000e+00> : vector<2x16xf32>
    %56 = vector.multi_reduction <add>, %55, %cst_23 [2] : vector<2x16x16xf32> to vector<2x16xf32>
    %57 = vector.shape_cast %56 : vector<2x16xf32> to vector<2x16x1xf32>
    %58 = vector.broadcast %57 : vector<2x16x1xf32> to vector<2x16x16xf32>
    %59 = arith.divf %55, %58 : vector<2x16x16xf32>
    %60 = vector.extract_strided_slice %59 {offsets = [0, 0, 0], sizes = [2, 1, 16], strides = [1, 1, 1]} : vector<2x16x16xf32> to vector<2x1x16xf32>
    %61 = vector.shape_cast %60 : vector<2x1x16xf32> to vector<2x16xf32>
    %62 = arith.addf %32, %61 : vector<2x16xf32>
    "tpu.trace_start"() <{level = 10 : i32, message = "bnm,bmd->bnd"}> : () -> ()
    %cst_24 = arith.constant dense<0.000000e+00> : vector<2x16x8xf32>
    %63 = tpu.matmul %59, %44, %cst_24 {dimension_numbers = #tpu.dot_dimension_numbers<[2], [1], [1], [2], [0, 0, 0, 1, 1, 2], [0], [0]>} : vector<2x16x16xf32>, vector<2x16x8xf32>, vector<2x16x8xf32> -> vector<2x16x8xf32>
    "tpu.trace_stop"() : () -> ()
    %64 = vector.shape_cast %63 : vector<2x16x8xf32> to vector<32x8xf32>
    %c1_25 = arith.constant 1 : index
    %c0_26 = arith.constant 0 : index
    %c0_27 = arith.constant 0 : index
    %65 = vector.load %arg4[%c1_25, %c0_26, %c0_27] : memref<4x8x32xf32, #tpu.memory_space<vmem>>, vector<1x8x32xf32>
    %66 = vector.shape_cast %65 : vector<1x8x32xf32> to vector<8x32xf32>
    %cst_28 = arith.constant dense<0.000000e+00> : vector<32x32xf32>
    %67 = tpu.matmul %64, %66, %cst_28 {dimension_numbers = #tpu.dot_dimension_numbers<[1], [0], [0], [1], [0, 0, 1, 1], [], []>} : vector<32x8xf32>, vector<8x32xf32>, vector<32x32xf32> -> vector<32x32xf32>
    %68 = arith.addf %38, %67 : vector<32x32xf32>
    %69 = vector.extract_strided_slice %6 {offsets = [0, 16], sizes = [32, 8], strides = [1, 1]} : vector<32x96xf32> to vector<32x8xf32>
    %70 = vector.extract_strided_slice %6 {offsets = [0, 48], sizes = [32, 8], strides = [1, 1]} : vector<32x96xf32> to vector<32x8xf32>
    %71 = vector.extract_strided_slice %6 {offsets = [0, 80], sizes = [32, 8], strides = [1, 1]} : vector<32x96xf32> to vector<32x8xf32>
    %72 = vector.shape_cast %69 : vector<32x8xf32> to vector<2x16x8xf32>
    %73 = vector.shape_cast %70 : vector<32x8xf32> to vector<2x16x8xf32>
    %74 = vector.shape_cast %71 : vector<32x8xf32> to vector<2x16x8xf32>
    "tpu.trace_start"() <{level = 10 : i32, message = "bnd,bmd->bnm"}> : () -> ()
    %cst_29 = arith.constant dense<0.000000e+00> : vector<2x16x16xf32>
    %75 = tpu.matmul %72, %73, %cst_29 {dimension_numbers = #tpu.dot_dimension_numbers<[2], [2], [1], [1], [0, 0, 0, 1, 1, 1], [0], [0]>} : vector<2x16x8xf32>, vector<2x16x8xf32>, vector<2x16x16xf32> -> vector<2x16x16xf32>
    "tpu.trace_stop"() : () -> ()
    %c2 = arith.constant 2 : index
    %c0_30 = arith.constant 0 : index
    %c0_31 = arith.constant 0 : index
    %76 = vector.load %arg6[%c2, %c0_30, %c0_31] : memref<4x16x16xf32, #tpu.memory_space<vmem>>, vector<1x16x16xf32>
    %77 = vector.shape_cast %76 : vector<1x16x16xf32> to vector<16x16xf32>
    %78 = vector.shape_cast %77 : vector<16x16xf32> to vector<1x16x16xf32>
    %79 = vector.broadcast %78 : vector<1x16x16xf32> to vector<2x16x16xf32>
    %80 = arith.addf %75, %79 : vector<2x16x16xf32>
    %cst_32 = arith.constant dense<0xFF800000> : vector<2x16xf32>
    %81 = vector.multi_reduction <maximumf>, %80, %cst_32 [2] : vector<2x16x16xf32> to vector<2x16xf32>
    %82 = vector.shape_cast %81 : vector<2x16xf32> to vector<2x16x1xf32>
    %83 = vector.broadcast %82 : vector<2x16x1xf32> to vector<2x16x16xf32>
    %84 = arith.subf %80, %83 : vector<2x16x16xf32>
    %85 = math.exp %84 : vector<2x16x16xf32>
    %cst_33 = arith.constant dense<0.000000e+00> : vector<2x16xf32>
    %86 = vector.multi_reduction <add>, %85, %cst_33 [2] : vector<2x16x16xf32> to vector<2x16xf32>
    %87 = vector.shape_cast %86 : vector<2x16xf32> to vector<2x16x1xf32>
    %88 = vector.broadcast %87 : vector<2x16x1xf32> to vector<2x16x16xf32>
    %89 = arith.divf %85, %88 : vector<2x16x16xf32>
    %90 = vector.extract_strided_slice %89 {offsets = [0, 0, 0], sizes = [2, 1, 16], strides = [1, 1, 1]} : vector<2x16x16xf32> to vector<2x1x16xf32>
    %91 = vector.shape_cast %90 : vector<2x1x16xf32> to vector<2x16xf32>
    %92 = arith.addf %62, %91 : vector<2x16xf32>
    "tpu.trace_start"() <{level = 10 : i32, message = "bnm,bmd->bnd"}> : () -> ()
    %cst_34 = arith.constant dense<0.000000e+00> : vector<2x16x8xf32>
    %93 = tpu.matmul %89, %74, %cst_34 {dimension_numbers = #tpu.dot_dimension_numbers<[2], [1], [1], [2], [0, 0, 0, 1, 1, 2], [0], [0]>} : vector<2x16x16xf32>, vector<2x16x8xf32>, vector<2x16x8xf32> -> vector<2x16x8xf32>
    "tpu.trace_stop"() : () -> ()
    %94 = vector.shape_cast %93 : vector<2x16x8xf32> to vector<32x8xf32>
    %c2_35 = arith.constant 2 : index
    %c0_36 = arith.constant 0 : index
    %c0_37 = arith.constant 0 : index
    %95 = vector.load %arg4[%c2_35, %c0_36, %c0_37] : memref<4x8x32xf32, #tpu.memory_space<vmem>>, vector<1x8x32xf32>
    %96 = vector.shape_cast %95 : vector<1x8x32xf32> to vector<8x32xf32>
    %cst_38 = arith.constant dense<0.000000e+00> : vector<32x32xf32>
    %97 = tpu.matmul %94, %96, %cst_38 {dimension_numbers = #tpu.dot_dimension_numbers<[1], [0], [0], [1], [0, 0, 1, 1], [], []>} : vector<32x8xf32>, vector<8x32xf32>, vector<32x32xf32> -> vector<32x32xf32>
    %98 = arith.addf %68, %97 : vector<32x32xf32>
    %99 = vector.extract_strided_slice %6 {offsets = [0, 24], sizes = [32, 8], strides = [1, 1]} : vector<32x96xf32> to vector<32x8xf32>
    %100 = vector.extract_strided_slice %6 {offsets = [0, 56], sizes = [32, 8], strides = [1, 1]} : vector<32x96xf32> to vector<32x8xf32>
    %101 = vector.extract_strided_slice %6 {offsets = [0, 88], sizes = [32, 8], strides = [1, 1]} : vector<32x96xf32> to vector<32x8xf32>
    %102 = vector.shape_cast %99 : vector<32x8xf32> to vector<2x16x8xf32>
    %103 = vector.shape_cast %100 : vector<32x8xf32> to vector<2x16x8xf32>
    %104 = vector.shape_cast %101 : vector<32x8xf32> to vector<2x16x8xf32>
    "tpu.trace_start"() <{level = 10 : i32, message = "bnd,bmd->bnm"}> : () -> ()
    %cst_39 = arith.constant dense<0.000000e+00> : vector<2x16x16xf32>
    %105 = tpu.matmul %102, %103, %cst_39 {dimension_numbers = #tpu.dot_dimension_numbers<[2], [2], [1], [1], [0, 0, 0, 1, 1, 1], [0], [0]>} : vector<2x16x8xf32>, vector<2x16x8xf32>, vector<2x16x16xf32> -> vector<2x16x16xf32>
    "tpu.trace_stop"() : () -> ()
    %c3 = arith.constant 3 : index
    %c0_40 = arith.constant 0 : index
    %c0_41 = arith.constant 0 : index
    %106 = vector.load %arg6[%c3, %c0_40, %c0_41] : memref<4x16x16xf32, #tpu.memory_space<vmem>>, vector<1x16x16xf32>
    %107 = vector.shape_cast %106 : vector<1x16x16xf32> to vector<16x16xf32>
    %108 = vector.shape_cast %107 : vector<16x16xf32> to vector<1x16x16xf32>
    %109 = vector.broadcast %108 : vector<1x16x16xf32> to vector<2x16x16xf32>
    %110 = arith.addf %105, %109 : vector<2x16x16xf32>
    %cst_42 = arith.constant dense<0xFF800000> : vector<2x16xf32>
    %111 = vector.multi_reduction <maximumf>, %110, %cst_42 [2] : vector<2x16x16xf32> to vector<2x16xf32>
    %112 = vector.shape_cast %111 : vector<2x16xf32> to vector<2x16x1xf32>
    %113 = vector.broadcast %112 : vector<2x16x1xf32> to vector<2x16x16xf32>
    %114 = arith.subf %110, %113 : vector<2x16x16xf32>
    %115 = math.exp %114 : vector<2x16x16xf32>
    %cst_43 = arith.constant dense<0.000000e+00> : vector<2x16xf32>
    %116 = vector.multi_reduction <add>, %115, %cst_43 [2] : vector<2x16x16xf32> to vector<2x16xf32>
    %117 = vector.shape_cast %116 : vector<2x16xf32> to vector<2x16x1xf32>
    %118 = vector.broadcast %117 : vector<2x16x1xf32> to vector<2x16x16xf32>
    %119 = arith.divf %115, %118 : vector<2x16x16xf32>
    %120 = vector.extract_strided_slice %119 {offsets = [0, 0, 0], sizes = [2, 1, 16], strides = [1, 1, 1]} : vector<2x16x16xf32> to vector<2x1x16xf32>
    %121 = vector.shape_cast %120 : vector<2x1x16xf32> to vector<2x16xf32>
    %122 = arith.addf %92, %121 : vector<2x16xf32>
    "tpu.trace_start"() <{level = 10 : i32, message = "bnm,bmd->bnd"}> : () -> ()
    %cst_44 = arith.constant dense<0.000000e+00> : vector<2x16x8xf32>
    %123 = tpu.matmul %119, %104, %cst_44 {dimension_numbers = #tpu.dot_dimension_numbers<[2], [1], [1], [2], [0, 0, 0, 1, 1, 2], [0], [0]>} : vector<2x16x16xf32>, vector<2x16x8xf32>, vector<2x16x8xf32> -> vector<2x16x8xf32>
    "tpu.trace_stop"() : () -> ()
    %124 = vector.shape_cast %123 : vector<2x16x8xf32> to vector<32x8xf32>
    %c3_45 = arith.constant 3 : index
    %c0_46 = arith.constant 0 : index
    %c0_47 = arith.constant 0 : index
    %125 = vector.load %arg4[%c3_45, %c0_46, %c0_47] : memref<4x8x32xf32, #tpu.memory_space<vmem>>, vector<1x8x32xf32>
    %126 = vector.shape_cast %125 : vector<1x8x32xf32> to vector<8x32xf32>
    %cst_48 = arith.constant dense<0.000000e+00> : vector<32x32xf32>
    %127 = tpu.matmul %124, %126, %cst_48 {dimension_numbers = #tpu.dot_dimension_numbers<[1], [0], [0], [1], [0, 0, 1, 1], [], []>} : vector<32x8xf32>, vector<8x32xf32>, vector<32x32xf32> -> vector<32x32xf32>
    %128 = arith.addf %98, %127 : vector<32x32xf32>
    %c0_49 = arith.constant 0 : index
    %c0_50 = arith.constant 0 : index
    %129 = vector.load %arg5[%c0_49, %c0_50] : memref<1x32xf32, #tpu.memory_space<vmem>>, vector<1x32xf32>
    %130 = vector.broadcast %129 : vector<1x32xf32> to vector<32x32xf32>
    %131 = arith.addf %128, %130 : vector<32x32xf32>
    %132 = vector.shape_cast %131 : vector<32x32xf32> to vector<2x16x32xf32>
    %c0_51 = arith.constant 0 : index
    %c0_52 = arith.constant 0 : index
    %c0_53 = arith.constant 0 : index
    %133 = vector.load %arg7[%c0_51, %c0_52, %c0_53] : memref<2x16x32xf32, #tpu.memory_space<vmem>>, vector<2x16x32xf32>
    tpu.vector_store %arg7[%c0_51, %c0_52, %c0_53], %132 {strides = array<i32>} : memref<2x16x32xf32, #tpu.memory_space<vmem>>, vector<2x16x32xf32>,
    %cst_54 = arith.constant 2.500000e-01 : f32
    %134 = vector.broadcast %cst_54 : f32 to vector<2x16xf32>
    %135 = arith.mulf %122, %134 : vector<2x16xf32>
    %c0_55 = arith.constant 0 : index
    %c0_56 = arith.constant 0 : index
    %136 = vector.load %arg8[%c0_55, %c0_56] : memref<2x16xf32, #tpu.memory_space<vmem>>, vector<2x16xf32>
    tpu.vector_store %arg8[%c0_55, %c0_56], %135 {strides = array<i32>} : memref<2x16xf32, #tpu.memory_space<vmem>>, vector<2x16xf32>,
    return
  }
  func.func @transform_0(%arg0: i32) -> (i32, i32, i32) {
    %c0_i32 = arith.constant 0 : i32
    %c0_i32_0 = arith.constant 0 : i32
    %c0_i32_1 = arith.constant 0 : i32
    return %arg0, %c0_i32, %c0_i32_0 : i32, i32, i32
  }
  func.func @transform_1(%arg0: i32) -> (i32, i32) {
    %c0_i32 = arith.constant 0 : i32
    %c0_i32_0 = arith.constant 0 : i32
    %c0_i32_1 = arith.constant 0 : i32
    return %c0_i32, %c0_i32_0 : i32, i32
  }
  func.func @transform_2(%arg0: i32) -> (i32, i32) {
    %c0_i32 = arith.constant 0 : i32
    %c0_i32_0 = arith.constant 0 : i32
    %c0_i32_1 = arith.constant 0 : i32
    return %c0_i32, %c0_i32_0 : i32, i32
  }
  func.func @transform_3(%arg0: i32) -> (i32, i32, i32) {
    %c0_i32 = arith.constant 0 : i32
    %c0_i32_0 = arith.constant 0 : i32
    %c0_i32_1 = arith.constant 0 : i32
    %c0_i32_2 = arith.constant 0 : i32
    return %c0_i32, %c0_i32_0, %c0_i32_1 : i32, i32, i32
  }
  func.func @transform_4(%arg0: i32) -> (i32, i32) {
    %c0_i32 = arith.constant 0 : i32
    %c0_i32_0 = arith.constant 0 : i32
    %c0_i32_1 = arith.constant 0 : i32
    return %c0_i32, %c0_i32_0 : i32, i32
  }
  func.func @transform_5(%arg0: i32) -> (i32, i32, i32) {
    %c0_i32 = arith.constant 0 : i32
    %c0_i32_0 = arith.constant 0 : i32
    %c0_i32_1 = arith.constant 0 : i32
    %c0_i32_2 = arith.constant 0 : i32
    return %c0_i32, %c0_i32_0, %c0_i32_1 : i32, i32, i32
  }
  func.func @transform_6(%arg0: i32) -> (i32, i32, i32) {
    %c0_i32 = arith.constant 0 : i32
    %c0_i32_0 = arith.constant 0 : i32
    %c0_i32_1 = arith.constant 0 : i32
    return %arg0, %c0_i32, %c0_i32_0 : i32, i32, i32
  }
  func.func @transform_7(%arg0: i32) -> (i32, i32) {
    %c0_i32 = arith.constant 0 : i32
    %c0_i32_0 = arith.constant 0 : i32
    return %arg0, %c0_i32 : i32, i32
  }
}

</mosaic_0001>

<llo_original>
// kernel: tpu_custom_call.1
$region0: #{tpu_custom_call.1}
  #allocation0 [shape = 'u32[]', space=smem, size = 0x4, offset = 0x4, fixed_abs, tag = 'smem constant byte address 0x4 - core index']
  #allocation1 [shape = 'u32[144,128]{1,0:T(1,128)}', space=vmem, size = 0x12000, scoped, tag = 'internal scratch']
  %s0 = inlined_call_operand.hbm [shape: f32[2,16,32], index: 0, kind: input, shape index: {}]
  %s1 = inlined_call_operand.hbm [shape: f32[32,96], index: 1, kind: input, shape index: {}]
  %s2 = inlined_call_operand.vmem [shape: f32[1,96], index: 2, kind: input, shape index: {}]
  %s3 = inlined_call_operand.hbm [shape: f32[4,8,32], index: 3, kind: input, shape index: {}]
  %s4 = inlined_call_operand.vmem [shape: f32[1,32], index: 4, kind: input, shape index: {}]
  %s5 = inlined_call_operand.hbm [shape: f32[4,16,16], index: 5, kind: input, shape index: {}]
  %s6 = inlined_call_operand.hbm [shape: f32[2,16,32], index: 6, kind: output, shape index: {0}]
  %s7 = inlined_call_operand.hbm [shape: f32[2,16], index: 7, kind: output, shape index: {1}]
  %8 = xla_tuple %s6, %s7
  %s9 = sld [smem:[#allocation0]]
  $region58: #{tpu_custom_call.1} parent=0
    _
  %s11 = ssub.s32 1, %s9
  %s12 = scalar_select 0, %s11, %s9
  $region1: #{tpu_custom_call.1} parent=0
    #allocation2 [shape = 'u8[16384]{0}', space=vmem, size = 0x4000, scoped, tag = 'input window, operand 0, single buffered']
    #allocation3 [shape = 's32[1]{0}', space=sflag, size = 0x4, scoped, tag = 'scoped memory for tpu_custom_call.1']
    #allocation4 [shape = 's32[1]{0}', space=sflag, size = 0x4, scoped, tag = 'scoped memory for tpu_custom_call.1']
    #allocation5 [shape = 'u8[16384]{0}', space=vmem, size = 0x4000, scoped, tag = 'input window, operand 1, single buffered']
    #allocation6 [shape = 's32[1]{0}', space=sflag, size = 0x4, scoped, tag = 'scoped memory for tpu_custom_call.1']
    #allocation7 [shape = 'u8[16384]{0}', space=vmem, size = 0x4000, scoped, tag = 'input window, operand 3, single buffered']
    #allocation8 [shape = 'u8[32768]{0}', space=vmem, size = 0x8000, scoped, tag = 'input window, operand 5, single buffered']
    #allocation9 [shape = 's32[1]{0}', space=sflag, size = 0x4, scoped, tag = 'scoped memory for tpu_custom_call.1']
    #allocation10 [shape = 'u8[16384]{0}', space=vmem, size = 0x4000, scoped, tag = 'output window, operand 0, single buffered']
    #allocation11 [shape = 'u8[1024]{0}', space=vmem, size = 0x400, scoped, tag = 'output window, operand 1, single buffered']
    #allocation12 [shape = 's32[1]{0}', space=sflag, size = 0x4, scoped, tag = 'scoped memory for tpu_custom_call.1']
    %13 = vsyncpa [#allocation3], 0
    %14 = vsyncpa [#allocation6], 0
    %15 = vsyncpa [#allocation9], 0
    %16 = vsyncpa [#allocation4], 0
    %17 = vsyncpa [#allocation12], 0
    // Predicated region
    $region2: #{tpu_custom_call.1} parent=1 // pred_check
      _
    $region3: #{tpu_custom_call.1} parent=1 // pred_check_branch
      %19 = sbr.rel (0) target = $region5
    $region4: #{tpu_custom_call.1} parent=1 // pred_region
      %s21 = ssub.s32 512, 512
      %22 = vsyncadd [#allocation3], %s21
      %s23 = sshll.u32 [#allocation2], 4
      %s24 = int_to_ptr.vmem [resolvable:$true] %s23
      %29 = dma.hbm_to_vmem [thread:$0]  %s0, 512, %s24, [#allocation3], 128, 128, 8
    $region5: #{tpu_custom_call.1} parent=1 // pred_fallthru
      _
    // Predicated region
    $region6: #{tpu_custom_call.1} parent=1 // pred_check
      _
    $region7: #{tpu_custom_call.1} parent=1 // pred_check_branch
      %31 = sbr.rel (0) target = $region9
    $region8: #{tpu_custom_call.1} parent=1 // pred_region
      %s33 = ssub.s32 512, 512
      %34 = vsyncadd [#allocation6], %s33
      %s35 = sshll.u32 [#allocation5], 4
      %s36 = int_to_ptr.vmem [resolvable:$true] %s35
      %41 = dma.hbm_to_vmem [thread:$0]  %s1, 512, %s36, [#allocation6], 128, 128, 8
    $region9: #{tpu_custom_call.1} parent=1 // pred_fallthru
      _
    // Predicated region
    $region10: #{tpu_custom_call.1} parent=1 // pred_check
      _
    $region11: #{tpu_custom_call.1} parent=1 // pred_check_branch
      %43 = sbr.rel (0) target = $region13
    $region12: #{tpu_custom_call.1} parent=1 // pred_region
      _
    $region13: #{tpu_custom_call.1} parent=1 // pred_fallthru
      _
    // Predicated region
    $region14: #{tpu_custom_call.1} parent=1 // pred_check
      _
    $region15: #{tpu_custom_call.1} parent=1 // pred_check_branch
      %45 = sbr.rel (0) target = $region17
    $region16: #{tpu_custom_call.1} parent=1 // pred_region
      %s47 = ssub.s32 512, 512
      %48 = vsyncadd [#allocation6], %s47
      %s49 = sshll.u32 [#allocation7], 4
      %s50 = int_to_ptr.vmem [resolvable:$true] %s49
      %55 = dma.hbm_to_vmem [thread:$0]  %s3, 512, %s50, [#allocation6], 128, 128, 8
    $region17: #{tpu_custom_call.1} parent=1 // pred_fallthru
      _
    // Predicated region
    $region18: #{tpu_custom_call.1} parent=1 // pred_check
      _
    $region19: #{tpu_custom_call.1} parent=1 // pred_check_branch
      %57 = sbr.rel (0) target = $region21
    $region20: #{tpu_custom_call.1} parent=1 // pred_region
      _
    $region21: #{tpu_custom_call.1} parent=1 // pred_fallthru
      _
    // Predicated region
    $region22: #{tpu_custom_call.1} parent=1 // pred_check
      _
    $region23: #{tpu_custom_call.1} parent=1 // pred_check_branch
      %59 = sbr.rel (0) target = $region25
    $region24: #{tpu_custom_call.1} parent=1 // pred_region
      %s61 = ssub.s32 1024, 1024
      %62 = vsyncadd [#allocation9], %s61
      %s63 = sshll.u32 [#allocation8], 4
      %s64 = int_to_ptr.vmem [resolvable:$true] %s63
      %69 = dma.hbm_to_vmem [thread:$0]  %s5, 1024, %s64, [#allocation9], 128, 128, 8
    $region25: #{tpu_custom_call.1} parent=1 // pred_fallthru
      _
    // Predicated region
    $region26: #{tpu_custom_call.1} parent=1 // pred_check
      _
    $region27: #{tpu_custom_call.1} parent=1 // pred_check_branch
      %71 = sbr.rel (0) target = $region29
    $region28: #{tpu_custom_call.1} parent=1 // pred_region
      %72 = dma.done [#allocation3], 512
    $region29: #{tpu_custom_call.1} parent=1 // pred_fallthru
      _
    // Predicated region
    $region30: #{tpu_custom_call.1} parent=1 // pred_check
      _
    $region31: #{tpu_custom_call.1} parent=1 // pred_check_branch
      %74 = sbr.rel (0) target = $region33
    $region32: #{tpu_custom_call.1} parent=1 // pred_region
      %75 = dma.done [#allocation6], 512
    $region33: #{tpu_custom_call.1} parent=1 // pred_fallthru
      _
    // Predicated region
    $region34: #{tpu_custom_call.1} parent=1 // pred_check
      _
    $region35: #{tpu_custom_call.1} parent=1 // pred_check_branch
      %77 = sbr.rel (0) target = $region37
    $region36: #{tpu_custom_call.1} parent=1 // pred_region
      %78 = dma.done [#allocation6], 512
    $region37: #{tpu_custom_call.1} parent=1 // pred_fallthru
      _
    // Predicated region
    $region38: #{tpu_custom_call.1} parent=1 // pred_check
      _
    $region39: #{tpu_custom_call.1} parent=1 // pred_check_branch
      %80 = sbr.rel (0) target = $region41
    $region40: #{tpu_custom_call.1} parent=1 // pred_region
      %81 = dma.done [#allocation9], 1024
    $region41: #{tpu_custom_call.1} parent=1 // pred_fallthru
      _
    %v82 = vld [vmem:[#allocation2] sm:$0xff]
    %v83 = vld [vmem:[#allocation2 + $0x8] sm:$0xff]
    %v84 = vld [vmem:[#allocation2 + $0x10] sm:$0xff]
    %v85 = vld [vmem:[#allocation2 + $0x18] sm:$0xff]
    %v86 = vld [vmem:[#allocation5] sm:$0xff]
    %v87 = vld [vmem:[#allocation5 + $0x8] sm:$0xff]
    %v88 = vld [vmem:[#allocation5 + $0x10] sm:$0xff]
    %v89 = vld [vmem:[#allocation5 + $0x18] sm:$0xff]
    %v90 = vld [vmem:[%s2] sm:$0x1]
    %v92 = vlaneseq
    %v93 = vshrl.u32 %v92, 7
    %v94 = vsub.s32 0, %v93
    %v95 = vrot.slane %v90, %v94
    %vm97 = vcmask 261120
    %v99 = vsel %vm97, %v82, 0
    %v102 = vsel %vm97, %v83, 0
    %v105 = vsel %vm97, %v84, 0
    %v108 = vsel %vm97, %v85, 0
    %110 = vmatprep.subr.mxu0 0.0
    %111 = vmatpush1.msra.mxu0 0.0
    %112 = vmatprep.subr.mxu0 0.0
    %113 = vmatpush1.msra.mxu0 0.0
    %114 = vmatprep.subr.mxu0 0.0
    %115 = vmatpush1.msra.mxu0 0.0
    %116 = vmatprep.subr.mxu0 0.0
    %117 = vmatpush1.msra.mxu0 0.0
    %118 = vmatprep.subr.mxu0 0.0
    %119 = vmatpush1.msra.mxu0 0.0
    %120 = vmatprep.subr.mxu0 0.0
    %121 = vmatpush1.msra.mxu0 0.0
    %122 = vmatprep.subr.mxu0 0.0
    %123 = vmatpush1.msra.mxu0 0.0
    %124 = vmatprep.subr.mxu0 0.0
    %125 = vmatpush1.msra.mxu0 0.0
    %126 = vmatprep.subr.mxu0 0.0
    %127 = vmatpush1.msra.mxu0 0.0
    %128 = vmatprep.subr.mxu0 0.0
    %129 = vmatpush1.msra.mxu0 0.0
    %130 = vmatprep.subr.mxu0 0.0
    %131 = vmatpush1.msra.mxu0 0.0
    %132 = vmatprep.subr.mxu0 0.0
    %133 = vmatpush1.msra.mxu0 0.0
    %134 = vmatprep.subr.mxu0 0.0
    %135 = vmatpush1.msra.mxu0 %v89
    %136 = vmatprep.subr.mxu0 0.0
    %137 = vmatpush1.msra.mxu0 %v88
    %138 = vmatprep.subr.mxu0 0.0
    %139 = vmatpush1.msra.mxu0 %v87
    %140 = vmatprep.subr.mxu0 0.0
    %141 = vmatpush1.msra.mxu0 %v86
    %142 = vmatprep.subr.mxu0 0.0
    %143 = vmatpush2.msra.mxu0 0.0
    %144 = vmatprep.subr.mxu0 0.0
    %145 = vmatpush2.msra.mxu0 0.0
    %146 = vmatprep.subr.mxu0 0.0
    %147 = vmatpush2.msra.mxu0 0.0
    %148 = vmatprep.subr.mxu0 0.0
    %149 = vmatpush2.msra.mxu0 0.0
    %150 = vmatprep.subr.mxu0 0.0
    %151 = vmatpush2.msra.mxu0 0.0
    %152 = vmatprep.subr.mxu0 0.0
    %153 = vmatpush2.msra.mxu0 0.0
    %154 = vmatprep.subr.mxu0 0.0
    %155 = vmatpush2.msra.mxu0 0.0
    %156 = vmatprep.subr.mxu0 0.0
    %157 = vmatpush2.msra.mxu0 0.0
    %158 = vmatprep.subr.mxu0 0.0
    %159 = vmatpush2.msra.mxu0 0.0
    %160 = vmatprep.subr.mxu0 0.0
    %161 = vmatpush2.msra.mxu0 0.0
    %162 = vmatprep.subr.mxu0 0.0
    %163 = vmatpush2.msra.mxu0 0.0
    %164 = vmatprep.subr.mxu0 0.0
    %165 = vmatpush2.msra.mxu0 0.0
    %166 = vmatprep.subr.mxu0 0.0
    %167 = vmatpush2.msra.mxu0 0.0
    %168 = vmatprep.subr.mxu0 0.0
    %169 = vmatpush2.msra.mxu0 0.0
    %170 = vmatprep.subr.mxu0 0.0
    %171 = vmatpush2.msra.mxu0 0.0
    %172 = vmatprep.subr.mxu0 0.0
    %173 = vmatpush2.msra.mxu0 0.0
    %174 = vmatprep.mubr.f32.mxu0 0.0
    %175 = vmatmul.mubr.f32.gmra.mxu0 %v99
    %v176 = vpop.f32.mrf.mxu0
    %v177 = vadd.f32 %v95, %v176
    %v178 = vpop.f32.mrf.mxu0
    %179 = vmatprep.mubr.f32.mxu0 0.0
    %180 = vmatmul.mubr.f32.gmra.mxu0 %v102
    %v181 = vpop.f32.mrf.mxu0
    %v182 = vadd.f32 %v95, %v181
    %v183 = vpop.f32.mrf.mxu0
    %184 = vmatprep.mubr.f32.mxu0 0.0
    %185 = vmatmul.mubr.f32.gmra.mxu0 %v105
    %v186 = vpop.f32.mrf.mxu0
    %v187 = vadd.f32 %v95, %v186
    %v188 = vpop.f32.mrf.mxu0
    %189 = vmatprep.mubr.f32.mxu0 0.0
    %190 = vmatmul.mubr.f32.gmra.mxu0 %v108
    %v191 = vpop.f32.mrf.mxu0
    %v192 = vadd.f32 %v95, %v191
    %v193 = vpop.f32.mrf.mxu0
    %194 = vdwg.mxu0
    %v195 = vld [vmem:[#allocation8] sm:$0xff]
    %v196 = vld [vmem:[#allocation8 + $0x8] sm:$0xff]
    %199 = vrot.lane.b32.xlu0 %v177, 96
    %v200 = vpop.permute.xlu0 %199
    %201 = vrot.lane.b32.xlu0 %v182, 96
    %v202 = vpop.permute.xlu0 %201
    %vm203 = vcmask 64512
    %v204 = vsel %vm203, %v177, 0
    %v206 = vsel %vm203, %v182, 0
    %v208 = vsel %vm203, %v200, 0
    %v210 = vsel %vm203, %v202, 0
    %212 = vmatprep.subr.mxu0 0.0
    %213 = vmatpush1.xpose.msra.mxu0 0.0
    %214 = vmatprep.subr.mxu0 0.0
    %215 = vmatpush1.xpose.msra.mxu0 0.0
    %216 = vmatprep.subr.mxu0 0.0
    %217 = vmatpush1.xpose.msra.mxu0 0.0
    %218 = vmatprep.subr.mxu0 0.0
    %219 = vmatpush1.xpose.msra.mxu0 0.0
    %220 = vmatprep.subr.mxu0 0.0
    %221 = vmatpush1.xpose.msra.mxu0 0.0
    %222 = vmatprep.subr.mxu0 0.0
    %223 = vmatpush1.xpose.msra.mxu0 0.0
    %224 = vmatprep.subr.mxu0 0.0
    %225 = vmatpush1.xpose.msra.mxu0 0.0
    %226 = vmatprep.subr.mxu0 0.0
    %227 = vmatpush1.xpose.msra.mxu0 0.0
    %228 = vmatprep.subr.mxu0 0.0
    %229 = vmatpush1.xpose.msra.mxu0 0.0
    %230 = vmatprep.subr.mxu0 0.0
    %231 = vmatpush1.xpose.msra.mxu0 0.0
    %232 = vmatprep.subr.mxu0 0.0
    %233 = vmatpush1.xpose.msra.mxu0 0.0
    %234 = vmatprep.subr.mxu0 0.0
    %235 = vmatpush1.xpose.msra.mxu0 0.0
    %236 = vmatprep.subr.mxu0 0.0
    %237 = vmatpush1.xpose.msra.mxu0 0.0
    %238 = vmatprep.subr.mxu0 0.0
    %239 = vmatpush1.xpose.msra.mxu0 0.0
    %240 = vmatprep.subr.mxu0 0.0
    %241 = vmatpush1.xpose.msra.mxu0 %v210
    %242 = vmatprep.subr.mxu0 0.0
    %243 = vmatpush1.xpose.msra.mxu0 %v208
    %244 = vmatprep.subr.mxu0 0.0
    %245 = vmatpush2.xpose.msra.mxu0 0.0
    %246 = vmatprep.subr.mxu0 0.0
    %247 = vmatpush2.xpose.msra.mxu0 0.0
    %248 = vmatprep.subr.mxu0 0.0
    %249 = vmatpush2.xpose.msra.mxu0 0.0
    %250 = vmatprep.subr.mxu0 0.0
    %251 = vmatpush2.xpose.msra.mxu0 0.0
    %252 = vmatprep.subr.mxu0 0.0
    %253 = vmatpush2.xpose.msra.mxu0 0.0
    %254 = vmatprep.subr.mxu0 0.0
    %255 = vmatpush2.xpose.msra.mxu0 0.0
    %256 = vmatprep.subr.mxu0 0.0
    %257 = vmatpush2.xpose.msra.mxu0 0.0
    %258 = vmatprep.subr.mxu0 0.0
    %259 = vmatpush2.xpose.msra.mxu0 0.0
    %260 = vmatprep.subr.mxu0 0.0
    %261 = vmatpush2.xpose.msra.mxu0 0.0
    %262 = vmatprep.subr.mxu0 0.0
    %263 = vmatpush2.xpose.msra.mxu0 0.0
    %264 = vmatprep.subr.mxu0 0.0
    %265 = vmatpush2.xpose.msra.mxu0 0.0
    %266 = vmatprep.subr.mxu0 0.0
    %267 = vmatpush2.xpose.msra.mxu0 0.0
    %268 = vmatprep.subr.mxu0 0.0
    %269 = vmatpush2.xpose.msra.mxu0 0.0
    %270 = vmatprep.subr.mxu0 0.0
    %271 = vmatpush2.xpose.msra.mxu0 0.0
    %272 = vmatprep.subr.mxu0 0.0
    %273 = vmatpush2.xpose.msra.mxu0 0.0
    %274 = vmatprep.subr.mxu0 0.0
    %275 = vmatpush2.xpose.msra.mxu0 0.0
    %276 = vmatprep.mubr.f32.mxu0 0.0
    %277 = vmatmul.mubr.f32.gmra.mxu0 %v204
    %v278 = vpop.f32.mrf.mxu0
    %v279 = vadd.f32 %v195, %v278
    %v280 = vpop.f32.mrf.mxu0
    %281 = vmatprep.mubr.f32.mxu0 0.0
    %282 = vmatmul.mubr.f32.gmra.mxu0 %v206
    %v283 = vpop.f32.mrf.mxu0
    %v284 = vadd.f32 %v196, %v283
    %v285 = vpop.f32.mrf.mxu0
    %286 = vdwg.mxu0
    %289 = vrot.lane.b32.xlu0 %v187, 96
    %v290 = vpop.permute.xlu0 %289
    %291 = vrot.lane.b32.xlu0 %v192, 96
    %v292 = vpop.permute.xlu0 %291
    %v293 = vsel %vm203, %v187, 0
    %v295 = vsel %vm203, %v192, 0
    %v297 = vsel %vm203, %v290, 0
    %v299 = vsel %vm203, %v292, 0
    %301 = vmatprep.subr.mxu0 0.0
    %302 = vmatpush1.xpose.msra.mxu0 0.0
    %303 = vmatprep.subr.mxu0 0.0
    %304 = vmatpush1.xpose.msra.mxu0 0.0
    %305 = vmatprep.subr.mxu0 0.0
    %306 = vmatpush1.xpose.msra.mxu0 0.0
    %307 = vmatprep.subr.mxu0 0.0
    %308 = vmatpush1.xpose.msra.mxu0 0.0
    %309 = vmatprep.subr.mxu0 0.0
    %310 = vmatpush1.xpose.msra.mxu0 0.0
    %311 = vmatprep.subr.mxu0 0.0
    %312 = vmatpush1.xpose.msra.mxu0 0.0
    %313 = vmatprep.subr.mxu0 0.0
    %314 = vmatpush1.xpose.msra.mxu0 0.0
    %315 = vmatprep.subr.mxu0 0.0
    %316 = vmatpush1.xpose.msra.mxu0 0.0
    %317 = vmatprep.subr.mxu0 0.0
    %318 = vmatpush1.xpose.msra.mxu0 0.0
    %319 = vmatprep.subr.mxu0 0.0
    %320 = vmatpush1.xpose.msra.mxu0 0.0
    %321 = vmatprep.subr.mxu0 0.0
    %322 = vmatpush1.xpose.msra.mxu0 0.0
    %323 = vmatprep.subr.mxu0 0.0
    %324 = vmatpush1.xpose.msra.mxu0 0.0
    %325 = vmatprep.subr.mxu0 0.0
    %326 = vmatpush1.xpose.msra.mxu0 0.0
    %327 = vmatprep.subr.mxu0 0.0
    %328 = vmatpush1.xpose.msra.mxu0 0.0
    %329 = vmatprep.subr.mxu0 0.0
    %330 = vmatpush1.xpose.msra.mxu0 %v299
    %331 = vmatprep.subr.mxu0 0.0
    %332 = vmatpush1.xpose.msra.mxu0 %v297
    %333 = vmatprep.subr.mxu0 0.0
    %334 = vmatpush2.xpose.msra.mxu0 0.0
    %335 = vmatprep.subr.mxu0 0.0
    %336 = vmatpush2.xpose.msra.mxu0 0.0
    %337 = vmatprep.subr.mxu0 0.0
    %338 = vmatpush2.xpose.msra.mxu0 0.0
    %339 = vmatprep.subr.mxu0 0.0
    %340 = vmatpush2.xpose.msra.mxu0 0.0
    %341 = vmatprep.subr.mxu0 0.0
    %342 = vmatpush2.xpose.msra.mxu0 0.0
    %343 = vmatprep.subr.mxu0 0.0
    %344 = vmatpush2.xpose.msra.mxu0 0.0
    %345 = vmatprep.subr.mxu0 0.0
    %346 = vmatpush2.xpose.msra.mxu0 0.0
    %347 = vmatprep.subr.mxu0 0.0
    %348 = vmatpush2.xpose.msra.mxu0 0.0
    %349 = vmatprep.subr.mxu0 0.0
    %350 = vmatpush2.xpose.msra.mxu0 0.0
    %351 = vmatprep.subr.mxu0 0.0
    %352 = vmatpush2.xpose.msra.mxu0 0.0
    %353 = vmatprep.subr.mxu0 0.0
    %354 = vmatpush2.xpose.msra.mxu0 0.0
    %355 = vmatprep.subr.mxu0 0.0
    %356 = vmatpush2.xpose.msra.mxu0 0.0
    %357 = vmatprep.subr.mxu0 0.0
    %358 = vmatpush2.xpose.msra.mxu0 0.0
    %359 = vmatprep.subr.mxu0 0.0
    %360 = vmatpush2.xpose.msra.mxu0 0.0
    %361 = vmatprep.subr.mxu0 0.0
    %362 = vmatpush2.xpose.msra.mxu0 0.0
    %363 = vmatprep.subr.mxu0 0.0
    %364 = vmatpush2.xpose.msra.mxu0 0.0
    %365 = vmatprep.mubr.f32.mxu0 0.0
    %366 = vmatmul.mubr.f32.gmra.mxu0 %v293
    %v367 = vpop.f32.mrf.mxu0
    %v368 = vadd.f32 %v195, %v367
    %v369 = vpop.f32.mrf.mxu0
    %370 = vmatprep.mubr.f32.mxu0 0.0
    %371 = vmatmul.mubr.f32.gmra.mxu0 %v295
    %v372 = vpop.f32.mrf.mxu0
    %v373 = vadd.f32 %v196, %v372
    %v374 = vpop.f32.mrf.mxu0
    %375 = vdwg.mxu0
    %vm376 = vcmask 130048
    %v377 = vsel %vm376, %v279, -inf
    %378 = vmax.xlane.f32.xlu0 %v377
    %v379 = vpop.xlane.xlu0 %378
    %v380 = vsel %vm376, %v284, -inf
    %381 = vmax.xlane.f32.xlu0 %v380
    %v382 = vpop.xlane.xlu0 %381
    %v383 = vsel %vm376, %v368, -inf
    %384 = vmax.xlane.f32.xlu0 %v383
    %v385 = vpop.xlane.xlu0 %384
    %v386 = vsel %vm376, %v373, -inf
    %387 = vmax.xlane.f32.xlu0 %v386
    %v388 = vpop.xlane.xlu0 %387
    %v389 = vsub.f32 %v279, %v379
    %v390 = vsub.f32 %v284, %v382
    %v391 = vsub.f32 %v368, %v385
    %v392 = vsub.f32 %v373, %v388
    %v393 = vmul.f32 %v389, 1.442695
    %v394 = vpow.pop %v393
    %v395 = vmul.f32 %v390, 1.442695
    %v396 = vpow.pop %v395
    %v397 = vmul.f32 %v391, 1.442695
    %v398 = vpow.pop %v397
    %v399 = vmul.f32 %v392, 1.442695
    %v400 = vpow.pop %v399
    %v401 = vsel %vm376, %v394, 0.0
    %402 = vadd.xlane.f32.xlu0 %v401
    %v403 = vpop.xlane.xlu0 %402
    %v404 = vsel %vm376, %v396, 0.0
    %405 = vadd.xlane.f32.xlu0 %v404
    %v406 = vpop.xlane.xlu0 %405
    %v407 = vsel %vm376, %v398, 0.0
    %408 = vadd.xlane.f32.xlu0 %v407
    %v409 = vpop.xlane.xlu0 %408
    %v410 = vsel %vm376, %v400, 0.0
    %411 = vadd.xlane.f32.xlu0 %v410
    %v412 = vpop.xlane.xlu0 %411
    %v413 = vrcp.pop %v403
    %v414 = vmul.f32 %v394, %v413
    %v415 = vrcp.pop %v406
    %v416 = vmul.f32 %v396, %v415
    %v417 = vrcp.pop %v409
    %v418 = vmul.f32 %v398, %v417
    %v419 = vrcp.pop %v412
    %v420 = vmul.f32 %v400, %v419
    %v421 = vadd.f32 %v414, 0.0
    %v422 = vadd.f32 %v418, 0.0
    %423 = vrot.lane.b32.xlu0 %v177, 64
    %v424 = vpop.permute.xlu0 %423
    %425 = vrot.lane.b32.xlu0 %v182, 64
    %v426 = vpop.permute.xlu0 %425
    %v430 = vsel %vm376, %v414, 0
    %v433 = vsel %vm376, %v416, 0
    %435 = vmatprep.subr.mxu0 0.0
    %436 = vmatpush1.msra.mxu0 0.0
    %437 = vmatprep.subr.mxu0 0.0
    %438 = vmatpush1.msra.mxu0 0.0
    %439 = vmatprep.subr.mxu0 0.0
    %440 = vmatpush1.msra.mxu0 0.0
    %441 = vmatprep.subr.mxu0 0.0
    %442 = vmatpush1.msra.mxu0 0.0
    %443 = vmatprep.subr.mxu0 0.0
    %444 = vmatpush1.msra.mxu0 0.0
    %445 = vmatprep.subr.mxu0 0.0
    %446 = vmatpush1.msra.mxu0 0.0
    %447 = vmatprep.subr.mxu0 0.0
    %448 = vmatpush1.msra.mxu0 0.0
    %449 = vmatprep.subr.mxu0 0.0
    %450 = vmatpush1.msra.mxu0 0.0
    %451 = vmatprep.subr.mxu0 0.0
    %452 = vmatpush1.msra.mxu0 0.0
    %453 = vmatprep.subr.mxu0 0.0
    %454 = vmatpush1.msra.mxu0 0.0
    %455 = vmatprep.subr.mxu0 0.0
    %456 = vmatpush1.msra.mxu0 0.0
    %457 = vmatprep.subr.mxu0 0.0
    %458 = vmatpush1.msra.mxu0 0.0
    %459 = vmatprep.subr.mxu0 0.0
    %460 = vmatpush1.msra.mxu0 0.0
    %461 = vmatprep.subr.mxu0 0.0
    %462 = vmatpush1.msra.mxu0 0.0
    %463 = vmatprep.subr.mxu0 0.0
    %464 = vmatpush1.msra.mxu0 %v426
    %465 = vmatprep.subr.mxu0 0.0
    %466 = vmatpush1.msra.mxu0 %v424
    %467 = vmatprep.subr.mxu0 0.0
    %468 = vmatpush2.msra.mxu0 0.0
    %469 = vmatprep.subr.mxu0 0.0
    %470 = vmatpush2.msra.mxu0 0.0
    %471 = vmatprep.subr.mxu0 0.0
    %472 = vmatpush2.msra.mxu0 0.0
    %473 = vmatprep.subr.mxu0 0.0
    %474 = vmatpush2.msra.mxu0 0.0
    %475 = vmatprep.subr.mxu0 0.0
    %476 = vmatpush2.msra.mxu0 0.0
    %477 = vmatprep.subr.mxu0 0.0
    %478 = vmatpush2.msra.mxu0 0.0
    %479 = vmatprep.subr.mxu0 0.0
    %480 = vmatpush2.msra.mxu0 0.0
    %481 = vmatprep.subr.mxu0 0.0
    %482 = vmatpush2.msra.mxu0 0.0
    %483 = vmatprep.subr.mxu0 0.0
    %484 = vmatpush2.msra.mxu0 0.0
    %485 = vmatprep.subr.mxu0 0.0
    %486 = vmatpush2.msra.mxu0 0.0
    %487 = vmatprep.subr.mxu0 0.0
    %488 = vmatpush2.msra.mxu0 0.0
    %489 = vmatprep.subr.mxu0 0.0
    %490 = vmatpush2.msra.mxu0 0.0
    %491 = vmatprep.subr.mxu0 0.0
    %492 = vmatpush2.msra.mxu0 0.0
    %493 = vmatprep.subr.mxu0 0.0
    %494 = vmatpush2.msra.mxu0 0.0
    %495 = vmatprep.subr.mxu0 0.0
    %496 = vmatpush2.msra.mxu0 0.0
    %497 = vmatprep.subr.mxu0 0.0
    %498 = vmatpush2.msra.mxu0 0.0
    %499 = vmatprep.mubr.f32.mxu0 0.0
    %500 = vmatmul.mubr.f32.gmra.mxu0 %v430
    %v501 = vpop.f32.mrf.mxu0
    %v502 = vadd.f32 0.0, %v501
    %v503 = vpop.f32.mrf.mxu0
    %504 = vmatprep.mubr.f32.mxu0 0.0
    %505 = vmatmul.mubr.f32.gmra.mxu0 %v433
    %v506 = vpop.f32.mrf.mxu0
    %v507 = vadd.f32 0.0, %v506
    %v508 = vpop.f32.mrf.mxu0
    %509 = vdwg.mxu0
    %510 = vrot.lane.b32.xlu0 %v187, 64
    %v511 = vpop.permute.xlu0 %510
    %512 = vrot.lane.b32.xlu0 %v192, 64
    %v513 = vpop.permute.xlu0 %512
    %v517 = vsel %vm376, %v418, 0
    %v520 = vsel %vm376, %v420, 0
    %522 = vmatprep.subr.mxu0 0.0
    %523 = vmatpush1.msra.mxu0 0.0
    %524 = vmatprep.subr.mxu0 0.0
    %525 = vmatpush1.msra.mxu0 0.0
    %526 = vmatprep.subr.mxu0 0.0
    %527 = vmatpush1.msra.mxu0 0.0
    %528 = vmatprep.subr.mxu0 0.0
    %529 = vmatpush1.msra.mxu0 0.0
    %530 = vmatprep.subr.mxu0 0.0
    %531 = vmatpush1.msra.mxu0 0.0
    %532 = vmatprep.subr.mxu0 0.0
    %533 = vmatpush1.msra.mxu0 0.0
    %534 = vmatprep.subr.mxu0 0.0
    %535 = vmatpush1.msra.mxu0 0.0
    %536 = vmatprep.subr.mxu0 0.0
    %537 = vmatpush1.msra.mxu0 0.0
    %538 = vmatprep.subr.mxu0 0.0
    %539 = vmatpush1.msra.mxu0 0.0
    %540 = vmatprep.subr.mxu0 0.0
    %541 = vmatpush1.msra.mxu0 0.0
    %542 = vmatprep.subr.mxu0 0.0
    %543 = vmatpush1.msra.mxu0 0.0
    %544 = vmatprep.subr.mxu0 0.0
    %545 = vmatpush1.msra.mxu0 0.0
    %546 = vmatprep.subr.mxu0 0.0
    %547 = vmatpush1.msra.mxu0 0.0
    %548 = vmatprep.subr.mxu0 0.0
    %549 = vmatpush1.msra.mxu0 0.0
    %550 = vmatprep.subr.mxu0 0.0
    %551 = vmatpush1.msra.mxu0 %v513
    %552 = vmatprep.subr.mxu0 0.0
    %553 = vmatpush1.msra.mxu0 %v511
    %554 = vmatprep.subr.mxu0 0.0
    %555 = vmatpush2.msra.mxu0 0.0
    %556 = vmatprep.subr.mxu0 0.0
    %557 = vmatpush2.msra.mxu0 0.0
    %558 = vmatprep.subr.mxu0 0.0
    %559 = vmatpush2.msra.mxu0 0.0
    %560 = vmatprep.subr.mxu0 0.0
    %561 = vmatpush2.msra.mxu0 0.0
    %562 = vmatprep.subr.mxu0 0.0
    %563 = vmatpush2.msra.mxu0 0.0
    %564 = vmatprep.subr.mxu0 0.0
    %565 = vmatpush2.msra.mxu0 0.0
    %566 = vmatprep.subr.mxu0 0.0
    %567 = vmatpush2.msra.mxu0 0.0
    %568 = vmatprep.subr.mxu0 0.0
    %569 = vmatpush2.msra.mxu0 0.0
    %570 = vmatprep.subr.mxu0 0.0
    %571 = vmatpush2.msra.mxu0 0.0
    %572 = vmatprep.subr.mxu0 0.0
    %573 = vmatpush2.msra.mxu0 0.0
    %574 = vmatprep.subr.mxu0 0.0
    %575 = vmatpush2.msra.mxu0 0.0
    %576 = vmatprep.subr.mxu0 0.0
    %577 = vmatpush2.msra.mxu0 0.0
    %578 = vmatprep.subr.mxu0 0.0
    %579 = vmatpush2.msra.mxu0 0.0
    %580 = vmatprep.subr.mxu0 0.0
    %581 = vmatpush2.msra.mxu0 0.0
    %582 = vmatprep.subr.mxu0 0.0
    %583 = vmatpush2.msra.mxu0 0.0
    %584 = vmatprep.subr.mxu0 0.0
    %585 = vmatpush2.msra.mxu0 0.0
    %586 = vmatprep.mubr.f32.mxu0 0.0
    %587 = vmatmul.mubr.f32.gmra.mxu0 %v517
    %v588 = vpop.f32.mrf.mxu0
    %v589 = vadd.f32 0.0, %v588
    %v590 = vpop.f32.mrf.mxu0
    %591 = vmatprep.mubr.f32.mxu0 0.0
    %592 = vmatmul.mubr.f32.gmra.mxu0 %v520
    %v593 = vpop.f32.mrf.mxu0
    %v594 = vadd.f32 0.0, %v593
    %v595 = vpop.f32.mrf.mxu0
    %596 = vdwg.mxu0
    %v597 = vld [vmem:[#allocation7] sm:$0xff]
    %s598 = scalar_lea.vmem [#allocation8], 16
    %v599 = vld [vmem:[%s598] sm:$0xff]
    %v600 = vld [vmem:[%s598 + $0x8] sm:$0xff]
    %601 = vrot.lane.b32.xlu0 %v177, 120
    %v602 = vpop.permute.xlu0 %601
    %603 = vrot.lane.b32.xlu0 %v182, 120
    %v604 = vpop.permute.xlu0 %603
    %605 = vrot.lane.b32.xlu0 %v177, 88
    %v606 = vpop.permute.xlu0 %605
    %607 = vrot.lane.b32.xlu0 %v182, 88
    %v608 = vpop.permute.xlu0 %607
    %v609 = vsel %vm203, %v602, 0
    %v611 = vsel %vm203, %v604, 0
    %v613 = vsel %vm203, %v606, 0
    %v615 = vsel %vm203, %v608, 0
    %617 = vmatprep.subr.mxu0 0.0
    %618 = vmatpush1.xpose.msra.mxu0 0.0
    %619 = vmatprep.subr.mxu0 0.0
    %620 = vmatpush1.xpose.msra.mxu0 0.0
    %621 = vmatprep.subr.mxu0 0.0
    %622 = vmatpush1.xpose.msra.mxu0 0.0
    %623 = vmatprep.subr.mxu0 0.0
    %624 = vmatpush1.xpose.msra.mxu0 0.0
    %625 = vmatprep.subr.mxu0 0.0
    %626 = vmatpush1.xpose.msra.mxu0 0.0
    %627 = vmatprep.subr.mxu0 0.0
    %628 = vmatpush1.xpose.msra.mxu0 0.0
    %629 = vmatprep.subr.mxu0 0.0
    %630 = vmatpush1.xpose.msra.mxu0 0.0
    %631 = vmatprep.subr.mxu0 0.0
    %632 = vmatpush1.xpose.msra.mxu0 0.0
    %633 = vmatprep.subr.mxu0 0.0
    %634 = vmatpush1.xpose.msra.mxu0 0.0
    %635 = vmatprep.subr.mxu0 0.0
    %636 = vmatpush1.xpose.msra.mxu0 0.0
    %637 = vmatprep.subr.mxu0 0.0
    %638 = vmatpush1.xpose.msra.mxu0 0.0
    %639 = vmatprep.subr.mxu0 0.0
    %640 = vmatpush1.xpose.msra.mxu0 0.0
    %641 = vmatprep.subr.mxu0 0.0
    %642 = vmatpush1.xpose.msra.mxu0 0.0
    %643 = vmatprep.subr.mxu0 0.0
    %644 = vmatpush1.xpose.msra.mxu0 0.0
    %645 = vmatprep.subr.mxu0 0.0
    %646 = vmatpush1.xpose.msra.mxu0 %v615
    %647 = vmatprep.subr.mxu0 0.0
    %648 = vmatpush1.xpose.msra.mxu0 %v613
    %649 = vmatprep.subr.mxu0 0.0
    %650 = vmatpush2.xpose.msra.mxu0 0.0
    %651 = vmatprep.subr.mxu0 0.0
    %652 = vmatpush2.xpose.msra.mxu0 0.0
    %653 = vmatprep.subr.mxu0 0.0
    %654 = vmatpush2.xpose.msra.mxu0 0.0
    %655 = vmatprep.subr.mxu0 0.0
    %656 = vmatpush2.xpose.msra.mxu0 0.0
    %657 = vmatprep.subr.mxu0 0.0
    %658 = vmatpush2.xpose.msra.mxu0 0.0
    %659 = vmatprep.subr.mxu0 0.0
    %660 = vmatpush2.xpose.msra.mxu0 0.0
    %661 = vmatprep.subr.mxu0 0.0
    %662 = vmatpush2.xpose.msra.mxu0 0.0
    %663 = vmatprep.subr.mxu0 0.0
    %664 = vmatpush2.xpose.msra.mxu0 0.0
    %665 = vmatprep.subr.mxu0 0.0
    %666 = vmatpush2.xpose.msra.mxu0 0.0
    %667 = vmatprep.subr.mxu0 0.0
    %668 = vmatpush2.xpose.msra.mxu0 0.0
    %669 = vmatprep.subr.mxu0 0.0
    %670 = vmatpush2.xpose.msra.mxu0 0.0
    %671 = vmatprep.subr.mxu0 0.0
    %672 = vmatpush2.xpose.msra.mxu0 0.0
    %673 = vmatprep.subr.mxu0 0.0
    %674 = vmatpush2.xpose.msra.mxu0 0.0
    %675 = vmatprep.subr.mxu0 0.0
    %676 = vmatpush2.xpose.msra.mxu0 0.0
    %677 = vmatprep.subr.mxu0 0.0
    %678 = vmatpush2.xpose.msra.mxu0 0.0
    %679 = vmatprep.subr.mxu0 0.0
    %680 = vmatpush2.xpose.msra.mxu0 0.0
    %681 = vmatprep.mubr.f32.mxu0 0.0
    %682 = vmatmul.mubr.f32.gmra.mxu0 %v609
    %v683 = vpop.f32.mrf.mxu0
    %v684 = vadd.f32 %v599, %v683
    %v685 = vpop.f32.mrf.mxu0
    %686 = vmatprep.mubr.f32.mxu0 0.0
    %687 = vmatmul.mubr.f32.gmra.mxu0 %v611
    %v688 = vpop.f32.mrf.mxu0
    %v689 = vadd.f32 %v600, %v688
    %v690 = vpop.f32.mrf.mxu0
    %691 = vdwg.mxu0
    %692 = vrot.lane.b32.xlu0 %v187, 120
    %v693 = vpop.permute.xlu0 %692
    %694 = vrot.lane.b32.xlu0 %v192, 120
    %v695 = vpop.permute.xlu0 %694
    %696 = vrot.lane.b32.xlu0 %v187, 88
    %v697 = vpop.permute.xlu0 %696
    %698 = vrot.lane.b32.xlu0 %v192, 88
    %v699 = vpop.permute.xlu0 %698
    %v700 = vsel %vm203, %v693, 0
    %v702 = vsel %vm203, %v695, 0
    %v704 = vsel %vm203, %v697, 0
    %v706 = vsel %vm203, %v699, 0
    %708 = vmatprep.subr.mxu0 0.0
    %709 = vmatpush1.xpose.msra.mxu0 0.0
    %710 = vmatprep.subr.mxu0 0.0
    %711 = vmatpush1.xpose.msra.mxu0 0.0
    %712 = vmatprep.subr.mxu0 0.0
    %713 = vmatpush1.xpose.msra.mxu0 0.0
    %714 = vmatprep.subr.mxu0 0.0
    %715 = vmatpush1.xpose.msra.mxu0 0.0
    %716 = vmatprep.subr.mxu0 0.0
    %717 = vmatpush1.xpose.msra.mxu0 0.0
    %718 = vmatprep.subr.mxu0 0.0
    %719 = vmatpush1.xpose.msra.mxu0 0.0
    %720 = vmatprep.subr.mxu0 0.0
    %721 = vmatpush1.xpose.msra.mxu0 0.0
    %722 = vmatprep.subr.mxu0 0.0
    %723 = vmatpush1.xpose.msra.mxu0 0.0
    %724 = vmatprep.subr.mxu0 0.0
    %725 = vmatpush1.xpose.msra.mxu0 0.0
    %726 = vmatprep.subr.mxu0 0.0
    %727 = vmatpush1.xpose.msra.mxu0 0.0
    %728 = vmatprep.subr.mxu0 0.0
    %729 = vmatpush1.xpose.msra.mxu0 0.0
    %730 = vmatprep.subr.mxu0 0.0
    %731 = vmatpush1.xpose.msra.mxu0 0.0
    %732 = vmatprep.subr.mxu0 0.0
    %733 = vmatpush1.xpose.msra.mxu0 0.0
    %734 = vmatprep.subr.mxu0 0.0
    %735 = vmatpush1.xpose.msra.mxu0 0.0
    %736 = vmatprep.subr.mxu0 0.0
    %737 = vmatpush1.xpose.msra.mxu0 %v706
    %738 = vmatprep.subr.mxu0 0.0
    %739 = vmatpush1.xpose.msra.mxu0 %v704
    %740 = vmatprep.subr.mxu0 0.0
    %741 = vmatpush2.xpose.msra.mxu0 0.0
    %742 = vmatprep.subr.mxu0 0.0
    %743 = vmatpush2.xpose.msra.mxu0 0.0
    %744 = vmatprep.subr.mxu0 0.0
    %745 = vmatpush2.xpose.msra.mxu0 0.0
    %746 = vmatprep.subr.mxu0 0.0
    %747 = vmatpush2.xpose.msra.mxu0 0.0
    %748 = vmatprep.subr.mxu0 0.0
    %749 = vmatpush2.xpose.msra.mxu0 0.0
    %750 = vmatprep.subr.mxu0 0.0
    %751 = vmatpush2.xpose.msra.mxu0 0.0
    %752 = vmatprep.subr.mxu0 0.0
    %753 = vmatpush2.xpose.msra.mxu0 0.0
    %754 = vmatprep.subr.mxu0 0.0
    %755 = vmatpush2.xpose.msra.mxu0 0.0
    %756 = vmatprep.subr.mxu0 0.0
    %757 = vmatpush2.xpose.msra.mxu0 0.0
    %758 = vmatprep.subr.mxu0 0.0
    %759 = vmatpush2.xpose.msra.mxu0 0.0
    %760 = vmatprep.subr.mxu0 0.0
    %761 = vmatpush2.xpose.msra.mxu0 0.0
    %762 = vmatprep.subr.mxu0 0.0
    %763 = vmatpush2.xpose.msra.mxu0 0.0
    %764 = vmatprep.subr.mxu0 0.0
    %765 = vmatpush2.xpose.msra.mxu0 0.0
    %766 = vmatprep.subr.mxu0 0.0
    %767 = vmatpush2.xpose.msra.mxu0 0.0
    %768 = vmatprep.subr.mxu0 0.0
    %769 = vmatpush2.xpose.msra.mxu0 0.0
    %770 = vmatprep.subr.mxu0 0.0
    %771 = vmatpush2.xpose.msra.mxu0 0.0
    %772 = vmatprep.mubr.f32.mxu0 0.0
    %773 = vmatmul.mubr.f32.gmra.mxu0 %v700
    %v774 = vpop.f32.mrf.mxu0
    %v775 = vadd.f32 %v599, %v774
    %v776 = vpop.f32.mrf.mxu0
    %777 = vmatprep.mubr.f32.mxu0 0.0
    %778 = vmatmul.mubr.f32.gmra.mxu0 %v702
    %v779 = vpop.f32.mrf.mxu0
    %v780 = vadd.f32 %v600, %v779
    %v781 = vpop.f32.mrf.mxu0
    %782 = vdwg.mxu0
    %v783 = vsel %vm376, %v684, -inf
    %784 = vmax.xlane.f32.xlu0 %v783
    %v785 = vpop.xlane.xlu0 %784
    %v786 = vsel %vm376, %v689, -inf
    %787 = vmax.xlane.f32.xlu0 %v786
    %v788 = vpop.xlane.xlu0 %787
    %v789 = vsel %vm376, %v775, -inf
    %790 = vmax.xlane.f32.xlu0 %v789
    %v791 = vpop.xlane.xlu0 %790
    %v792 = vsel %vm376, %v780, -inf
    %793 = vmax.xlane.f32.xlu0 %v792
    %v794 = vpop.xlane.xlu0 %793
    %v795 = vsub.f32 %v684, %v785
    %v796 = vsub.f32 %v689, %v788
    %v797 = vsub.f32 %v775, %v791
    %v798 = vsub.f32 %v780, %v794
    %v799 = vmul.f32 %v795, 1.442695
    %v800 = vpow.pop %v799
    %v801 = vmul.f32 %v796, 1.442695
    %v802 = vpow.pop %v801
    %v803 = vmul.f32 %v797, 1.442695
    %v804 = vpow.pop %v803
    %v805 = vmul.f32 %v798, 1.442695
    %v806 = vpow.pop %v805
    %v807 = vsel %vm376, %v800, 0.0
    %808 = vadd.xlane.f32.xlu0 %v807
    %v809 = vpop.xlane.xlu0 %808
    %v810 = vsel %vm376, %v802, 0.0
    %811 = vadd.xlane.f32.xlu0 %v810
    %v812 = vpop.xlane.xlu0 %811
    %v813 = vsel %vm376, %v804, 0.0
    %814 = vadd.xlane.f32.xlu0 %v813
    %v815 = vpop.xlane.xlu0 %814
    %v816 = vsel %vm376, %v806, 0.0
    %817 = vadd.xlane.f32.xlu0 %v816
    %v818 = vpop.xlane.xlu0 %817
    %v819 = vrcp.pop %v809
    %v820 = vmul.f32 %v800, %v819
    %v821 = vrcp.pop %v812
    %v822 = vmul.f32 %v802, %v821
    %v823 = vrcp.pop %v815
    %v824 = vmul.f32 %v804, %v823
    %v825 = vrcp.pop %v818
    %v826 = vmul.f32 %v806, %v825
    %v827 = vadd.f32 %v421, %v820
    %v828 = vadd.f32 %v422, %v824
    %829 = vrot.lane.b32.xlu0 %v177, 56
    %v830 = vpop.permute.xlu0 %829
    %831 = vrot.lane.b32.xlu0 %v182, 56
    %v832 = vpop.permute.xlu0 %831
    %v836 = vsel %vm376, %v820, 0
    %v839 = vsel %vm376, %v822, 0
    %841 = vmatprep.subr.mxu0 0.0
    %842 = vmatpush1.msra.mxu0 0.0
    %843 = vmatprep.subr.mxu0 0.0
    %844 = vmatpush1.msra.mxu0 0.0
    %845 = vmatprep.subr.mxu0 0.0
    %846 = vmatpush1.msra.mxu0 0.0
    %847 = vmatprep.subr.mxu0 0.0
    %848 = vmatpush1.msra.mxu0 0.0
    %849 = vmatprep.subr.mxu0 0.0
    %850 = vmatpush1.msra.mxu0 0.0
    %851 = vmatprep.subr.mxu0 0.0
    %852 = vmatpush1.msra.mxu0 0.0
    %853 = vmatprep.subr.mxu0 0.0
    %854 = vmatpush1.msra.mxu0 0.0
    %855 = vmatprep.subr.mxu0 0.0
    %856 = vmatpush1.msra.mxu0 0.0
    %857 = vmatprep.subr.mxu0 0.0
    %858 = vmatpush1.msra.mxu0 0.0
    %859 = vmatprep.subr.mxu0 0.0
    %860 = vmatpush1.msra.mxu0 0.0
    %861 = vmatprep.subr.mxu0 0.0
    %862 = vmatpush1.msra.mxu0 0.0
    %863 = vmatprep.subr.mxu0 0.0
    %864 = vmatpush1.msra.mxu0 0.0
    %865 = vmatprep.subr.mxu0 0.0
    %866 = vmatpush1.msra.mxu0 0.0
    %867 = vmatprep.subr.mxu0 0.0
    %868 = vmatpush1.msra.mxu0 0.0
    %869 = vmatprep.subr.mxu0 0.0
    %870 = vmatpush1.msra.mxu0 %v832
    %871 = vmatprep.subr.mxu0 0.0
    %872 = vmatpush1.msra.mxu0 %v830
    %873 = vmatprep.subr.mxu0 0.0
    %874 = vmatpush2.msra.mxu0 0.0
    %875 = vmatprep.subr.mxu0 0.0
    %876 = vmatpush2.msra.mxu0 0.0
    %877 = vmatprep.subr.mxu0 0.0
    %878 = vmatpush2.msra.mxu0 0.0
    %879 = vmatprep.subr.mxu0 0.0
    %880 = vmatpush2.msra.mxu0 0.0
    %881 = vmatprep.subr.mxu0 0.0
    %882 = vmatpush2.msra.mxu0 0.0
    %883 = vmatprep.subr.mxu0 0.0
    %884 = vmatpush2.msra.mxu0 0.0
    %885 = vmatprep.subr.mxu0 0.0
    %886 = vmatpush2.msra.mxu0 0.0
    %887 = vmatprep.subr.mxu0 0.0
    %888 = vmatpush2.msra.mxu0 0.0
    %889 = vmatprep.subr.mxu0 0.0
    %890 = vmatpush2.msra.mxu0 0.0
    %891 = vmatprep.subr.mxu0 0.0
    %892 = vmatpush2.msra.mxu0 0.0
    %893 = vmatprep.subr.mxu0 0.0
    %894 = vmatpush2.msra.mxu0 0.0
    %895 = vmatprep.subr.mxu0 0.0
    %896 = vmatpush2.msra.mxu0 0.0
    %897 = vmatprep.subr.mxu0 0.0
    %898 = vmatpush2.msra.mxu0 0.0
    %899 = vmatprep.subr.mxu0 0.0
    %900 = vmatpush2.msra.mxu0 0.0
    %901 = vmatprep.subr.mxu0 0.0
    %902 = vmatpush2.msra.mxu0 0.0
    %903 = vmatprep.subr.mxu0 0.0
    %904 = vmatpush2.msra.mxu0 0.0
    %905 = vmatprep.mubr.f32.mxu0 0.0
    %906 = vmatmul.mubr.f32.gmra.mxu0 %v836
    %v907 = vpop.f32.mrf.mxu0
    %v908 = vadd.f32 0.0, %v907
    %v909 = vpop.f32.mrf.mxu0
    %910 = vmatprep.mubr.f32.mxu0 0.0
    %911 = vmatmul.mubr.f32.gmra.mxu0 %v839
    %v912 = vpop.f32.mrf.mxu0
    %v913 = vadd.f32 0.0, %v912
    %v914 = vpop.f32.mrf.mxu0
    %915 = vdwg.mxu0
    %916 = vrot.lane.b32.xlu0 %v187, 56
    %v917 = vpop.permute.xlu0 %916
    %918 = vrot.lane.b32.xlu0 %v192, 56
    %v919 = vpop.permute.xlu0 %918
    %v923 = vsel %vm376, %v824, 0
    %v926 = vsel %vm376, %v826, 0
    %928 = vmatprep.subr.mxu0 0.0
    %929 = vmatpush1.msra.mxu0 0.0
    %930 = vmatprep.subr.mxu0 0.0
    %931 = vmatpush1.msra.mxu0 0.0
    %932 = vmatprep.subr.mxu0 0.0
    %933 = vmatpush1.msra.mxu0 0.0
    %934 = vmatprep.subr.mxu0 0.0
    %935 = vmatpush1.msra.mxu0 0.0
    %936 = vmatprep.subr.mxu0 0.0
    %937 = vmatpush1.msra.mxu0 0.0
    %938 = vmatprep.subr.mxu0 0.0
    %939 = vmatpush1.msra.mxu0 0.0
    %940 = vmatprep.subr.mxu0 0.0
    %941 = vmatpush1.msra.mxu0 0.0
    %942 = vmatprep.subr.mxu0 0.0
    %943 = vmatpush1.msra.mxu0 0.0
    %944 = vmatprep.subr.mxu0 0.0
    %945 = vmatpush1.msra.mxu0 0.0
    %946 = vmatprep.subr.mxu0 0.0
    %947 = vmatpush1.msra.mxu0 0.0
    %948 = vmatprep.subr.mxu0 0.0
    %949 = vmatpush1.msra.mxu0 0.0
    %950 = vmatprep.subr.mxu0 0.0
    %951 = vmatpush1.msra.mxu0 0.0
    %952 = vmatprep.subr.mxu0 0.0
    %953 = vmatpush1.msra.mxu0 0.0
    %954 = vmatprep.subr.mxu0 0.0
    %955 = vmatpush1.msra.mxu0 0.0
    %956 = vmatprep.subr.mxu0 0.0
    %957 = vmatpush1.msra.mxu0 %v919
    %958 = vmatprep.subr.mxu0 0.0
    %959 = vmatpush1.msra.mxu0 %v917
    %960 = vmatprep.subr.mxu0 0.0
    %961 = vmatpush2.msra.mxu0 0.0
    %962 = vmatprep.subr.mxu0 0.0
    %963 = vmatpush2.msra.mxu0 0.0
    %964 = vmatprep.subr.mxu0 0.0
    %965 = vmatpush2.msra.mxu0 0.0
    %966 = vmatprep.subr.mxu0 0.0
    %967 = vmatpush2.msra.mxu0 0.0
    %968 = vmatprep.subr.mxu0 0.0
    %969 = vmatpush2.msra.mxu0 0.0
    %970 = vmatprep.subr.mxu0 0.0
    %971 = vmatpush2.msra.mxu0 0.0
    %972 = vmatprep.subr.mxu0 0.0
    %973 = vmatpush2.msra.mxu0 0.0
    %974 = vmatprep.subr.mxu0 0.0
    %975 = vmatpush2.msra.mxu0 0.0
    %976 = vmatprep.subr.mxu0 0.0
    %977 = vmatpush2.msra.mxu0 0.0
    %978 = vmatprep.subr.mxu0 0.0
    %979 = vmatpush2.msra.mxu0 0.0
    %980 = vmatprep.subr.mxu0 0.0
    %981 = vmatpush2.msra.mxu0 0.0
    %982 = vmatprep.subr.mxu0 0.0
    %983 = vmatpush2.msra.mxu0 0.0
    %984 = vmatprep.subr.mxu0 0.0
    %985 = vmatpush2.msra.mxu0 0.0
    %986 = vmatprep.subr.mxu0 0.0
    %987 = vmatpush2.msra.mxu0 0.0
    %988 = vmatprep.subr.mxu0 0.0
    %989 = vmatpush2.msra.mxu0 0.0
    %990 = vmatprep.subr.mxu0 0.0
    %991 = vmatpush2.msra.mxu0 0.0
    %992 = vmatprep.mubr.f32.mxu0 0.0
    %993 = vmatmul.mubr.f32.gmra.mxu0 %v923
    %v994 = vpop.f32.mrf.mxu0
    %v995 = vadd.f32 0.0, %v994
    %v996 = vpop.f32.mrf.mxu0
    %997 = vmatprep.mubr.f32.mxu0 0.0
    %998 = vmatmul.mubr.f32.gmra.mxu0 %v926
    %v999 = vpop.f32.mrf.mxu0
    %v1000 = vadd.f32 0.0, %v999
    %v1001 = vpop.f32.mrf.mxu0
    %1002 = vdwg.mxu0
    %s1003 = scalar_lea.vmem [#allocation7], 8
    %v1004 = vld [vmem:[%s1003] sm:$0xff]
    %v1006 = vsel %vm203, %v908, 0
    %v1009 = vsel %vm203, %v913, 0
    %v1012 = vsel %vm203, %v995, 0
    %v1015 = vsel %vm203, %v1000, 0
    %1017 = vmatprep.subr.mxu0 0.0
    %1018 = vmatpush1.msra.mxu0 0.0
    %1019 = vmatprep.subr.mxu0 0.0
    %1020 = vmatpush1.msra.mxu0 0.0
    %1021 = vmatprep.subr.mxu0 0.0
    %1022 = vmatpush1.msra.mxu0 0.0
    %1023 = vmatprep.subr.mxu0 0.0
    %1024 = vmatpush1.msra.mxu0 0.0
    %1025 = vmatprep.subr.mxu0 0.0
    %1026 = vmatpush1.msra.mxu0 0.0
    %1027 = vmatprep.subr.mxu0 0.0
    %1028 = vmatpush1.msra.mxu0 0.0
    %1029 = vmatprep.subr.mxu0 0.0
    %1030 = vmatpush1.msra.mxu0 0.0
    %1031 = vmatprep.subr.mxu0 0.0
    %1032 = vmatpush1.msra.mxu0 0.0
    %1033 = vmatprep.subr.mxu0 0.0
    %1034 = vmatpush1.msra.mxu0 0.0
    %1035 = vmatprep.subr.mxu0 0.0
    %1036 = vmatpush1.msra.mxu0 0.0
    %1037 = vmatprep.subr.mxu0 0.0
    %1038 = vmatpush1.msra.mxu0 0.0
    %1039 = vmatprep.subr.mxu0 0.0
    %1040 = vmatpush1.msra.mxu0 0.0
    %1041 = vmatprep.subr.mxu0 0.0
    %1042 = vmatpush1.msra.mxu0 0.0
    %1043 = vmatprep.subr.mxu0 0.0
    %1044 = vmatpush1.msra.mxu0 0.0
    %1045 = vmatprep.subr.mxu0 0.0
    %1046 = vmatpush1.msra.mxu0 0.0
    %1047 = vmatprep.subr.mxu0 0.0
    %1048 = vmatpush1.msra.mxu0 %v1004
    %1049 = vmatprep.subr.mxu0 0.0
    %1050 = vmatpush2.msra.mxu0 0.0
    %1051 = vmatprep.subr.mxu0 0.0
    %1052 = vmatpush2.msra.mxu0 0.0
    %1053 = vmatprep.subr.mxu0 0.0
    %1054 = vmatpush2.msra.mxu0 0.0
    %1055 = vmatprep.subr.mxu0 0.0
    %1056 = vmatpush2.msra.mxu0 0.0
    %1057 = vmatprep.subr.mxu0 0.0
    %1058 = vmatpush2.msra.mxu0 0.0
    %1059 = vmatprep.subr.mxu0 0.0
    %1060 = vmatpush2.msra.mxu0 0.0
    %1061 = vmatprep.subr.mxu0 0.0
    %1062 = vmatpush2.msra.mxu0 0.0
    %1063 = vmatprep.subr.mxu0 0.0
    %1064 = vmatpush2.msra.mxu0 0.0
    %1065 = vmatprep.subr.mxu0 0.0
    %1066 = vmatpush2.msra.mxu0 0.0
    %1067 = vmatprep.subr.mxu0 0.0
    %1068 = vmatpush2.msra.mxu0 0.0
    %1069 = vmatprep.subr.mxu0 0.0
    %1070 = vmatpush2.msra.mxu0 0.0
    %1071 = vmatprep.subr.mxu0 0.0
    %1072 = vmatpush2.msra.mxu0 0.0
    %1073 = vmatprep.subr.mxu0 0.0
    %1074 = vmatpush2.msra.mxu0 0.0
    %1075 = vmatprep.subr.mxu0 0.0
    %1076 = vmatpush2.msra.mxu0 0.0
    %1077 = vmatprep.subr.mxu0 0.0
    %1078 = vmatpush2.msra.mxu0 0.0
    %1079 = vmatprep.subr.mxu0 0.0
    %1080 = vmatpush2.msra.mxu0 0.0
    %1081 = vmatprep.mubr.f32.mxu0 0.0
    %1082 = vmatmul.mubr.f32.gmra.mxu0 %v1006
    %v1083 = vpop.f32.mrf.mxu0
    %v1084 = vadd.f32 0.0, %v1083
    %v1085 = vpop.f32.mrf.mxu0
    %1086 = vmatprep.mubr.f32.mxu0 0.0
    %1087 = vmatmul.mubr.f32.gmra.mxu0 %v1009
    %v1088 = vpop.f32.mrf.mxu0
    %v1089 = vadd.f32 0.0, %v1088
    %v1090 = vpop.f32.mrf.mxu0
    %1091 = vmatprep.mubr.f32.mxu0 0.0
    %1092 = vmatmul.mubr.f32.gmra.mxu0 %v1012
    %v1093 = vpop.f32.mrf.mxu0
    %v1094 = vadd.f32 0.0, %v1093
    %v1095 = vpop.f32.mrf.mxu0
    %1096 = vmatprep.mubr.f32.mxu0 0.0
    %1097 = vmatmul.mubr.f32.gmra.mxu0 %v1015
    %v1098 = vpop.f32.mrf.mxu0
    %v1099 = vadd.f32 0.0, %v1098
    %v1100 = vpop.f32.mrf.mxu0
    %1101 = vdwg.mxu0
    %v1103 = vsel %vm203, %v502, 0
    %v1106 = vsel %vm203, %v507, 0
    %v1109 = vsel %vm203, %v589, 0
    %v1112 = vsel %vm203, %v594, 0
    %1114 = vmatprep.subr.mxu0 0.0
    %1115 = vmatpush1.msra.mxu0 0.0
    %1116 = vmatprep.subr.mxu0 0.0
    %1117 = vmatpush1.msra.mxu0 0.0
    %1118 = vmatprep.subr.mxu0 0.0
    %1119 = vmatpush1.msra.mxu0 0.0
    %1120 = vmatprep.subr.mxu0 0.0
    %1121 = vmatpush1.msra.mxu0 0.0
    %1122 = vmatprep.subr.mxu0 0.0
    %1123 = vmatpush1.msra.mxu0 0.0
    %1124 = vmatprep.subr.mxu0 0.0
    %1125 = vmatpush1.msra.mxu0 0.0
    %1126 = vmatprep.subr.mxu0 0.0
    %1127 = vmatpush1.msra.mxu0 0.0
    %1128 = vmatprep.subr.mxu0 0.0
    %1129 = vmatpush1.msra.mxu0 0.0
    %1130 = vmatprep.subr.mxu0 0.0
    %1131 = vmatpush1.msra.mxu0 0.0
    %1132 = vmatprep.subr.mxu0 0.0
    %1133 = vmatpush1.msra.mxu0 0.0
    %1134 = vmatprep.subr.mxu0 0.0
    %1135 = vmatpush1.msra.mxu0 0.0
    %1136 = vmatprep.subr.mxu0 0.0
    %1137 = vmatpush1.msra.mxu0 0.0
    %1138 = vmatprep.subr.mxu0 0.0
    %1139 = vmatpush1.msra.mxu0 0.0
    %1140 = vmatprep.subr.mxu0 0.0
    %1141 = vmatpush1.msra.mxu0 0.0
    %1142 = vmatprep.subr.mxu0 0.0
    %1143 = vmatpush1.msra.mxu0 0.0
    %1144 = vmatprep.subr.mxu0 0.0
    %1145 = vmatpush1.msra.mxu0 %v597
    %1146 = vmatprep.subr.mxu0 0.0
    %1147 = vmatpush2.msra.mxu0 0.0
    %1148 = vmatprep.subr.mxu0 0.0
    %1149 = vmatpush2.msra.mxu0 0.0
    %1150 = vmatprep.subr.mxu0 0.0
    %1151 = vmatpush2.msra.mxu0 0.0
    %1152 = vmatprep.subr.mxu0 0.0
    %1153 = vmatpush2.msra.mxu0 0.0
    %1154 = vmatprep.subr.mxu0 0.0
    %1155 = vmatpush2.msra.mxu0 0.0
    %1156 = vmatprep.subr.mxu0 0.0
    %1157 = vmatpush2.msra.mxu0 0.0
    %1158 = vmatprep.subr.mxu0 0.0
    %1159 = vmatpush2.msra.mxu0 0.0
    %1160 = vmatprep.subr.mxu0 0.0
    %1161 = vmatpush2.msra.mxu0 0.0
    %1162 = vmatprep.subr.mxu0 0.0
    %1163 = vmatpush2.msra.mxu0 0.0
    %1164 = vmatprep.subr.mxu0 0.0
    %1165 = vmatpush2.msra.mxu0 0.0
    %1166 = vmatprep.subr.mxu0 0.0
    %1167 = vmatpush2.msra.mxu0 0.0
    %1168 = vmatprep.subr.mxu0 0.0
    %1169 = vmatpush2.msra.mxu0 0.0
    %1170 = vmatprep.subr.mxu0 0.0
    %1171 = vmatpush2.msra.mxu0 0.0
    %1172 = vmatprep.subr.mxu0 0.0
    %1173 = vmatpush2.msra.mxu0 0.0
    %1174 = vmatprep.subr.mxu0 0.0
    %1175 = vmatpush2.msra.mxu0 0.0
    %1176 = vmatprep.subr.mxu0 0.0
    %1177 = vmatpush2.msra.mxu0 0.0
    %1178 = vmatprep.mubr.f32.mxu0 0.0
    %1179 = vmatmul.mubr.f32.gmra.mxu0 %v1103
    %v1180 = vpop.f32.mrf.mxu0
    %v1181 = vadd.f32 %v1084, %v1180
    %v1182 = vpop.f32.mrf.mxu0
    %1183 = vmatprep.mubr.f32.mxu0 0.0
    %1184 = vmatmul.mubr.f32.gmra.mxu0 %v1106
    %v1185 = vpop.f32.mrf.mxu0
    %v1186 = vadd.f32 %v1089, %v1185
    %v1187 = vpop.f32.mrf.mxu0
    %1188 = vmatprep.mubr.f32.mxu0 0.0
    %1189 = vmatmul.mubr.f32.gmra.mxu0 %v1109
    %v1190 = vpop.f32.mrf.mxu0
    %v1191 = vadd.f32 %v1094, %v1190
    %v1192 = vpop.f32.mrf.mxu0
    %1193 = vmatprep.mubr.f32.mxu0 0.0
    %1194 = vmatmul.mubr.f32.gmra.mxu0 %v1112
    %v1195 = vpop.f32.mrf.mxu0
    %v1196 = vadd.f32 %v1099, %v1195
    %v1197 = vpop.f32.mrf.mxu0
    %1198 = vdwg.mxu0
    %s1199 = scalar_lea.vmem [#allocation8], 32
    %v1200 = vld [vmem:[%s1199] sm:$0xff]
    %v1201 = vld [vmem:[%s1199 + $0x8] sm:$0xff]
    %1202 = vrot.lane.b32.xlu0 %v177, 112
    %v1203 = vpop.permute.xlu0 %1202
    %1204 = vrot.lane.b32.xlu0 %v182, 112
    %v1205 = vpop.permute.xlu0 %1204
    %1206 = vrot.lane.b32.xlu0 %v177, 80
    %v1207 = vpop.permute.xlu0 %1206
    %1208 = vrot.lane.b32.xlu0 %v182, 80
    %v1209 = vpop.permute.xlu0 %1208
    %v1210 = vsel %vm203, %v1203, 0
    %v1212 = vsel %vm203, %v1205, 0
    %v1214 = vsel %vm203, %v1207, 0
    %v1216 = vsel %vm203, %v1209, 0
    %1218 = vmatprep.subr.mxu0 0.0
    %1219 = vmatpush1.xpose.msra.mxu0 0.0
    %1220 = vmatprep.subr.mxu0 0.0
    %1221 = vmatpush1.xpose.msra.mxu0 0.0
    %1222 = vmatprep.subr.mxu0 0.0
    %1223 = vmatpush1.xpose.msra.mxu0 0.0
    %1224 = vmatprep.subr.mxu0 0.0
    %1225 = vmatpush1.xpose.msra.mxu0 0.0
    %1226 = vmatprep.subr.mxu0 0.0
    %1227 = vmatpush1.xpose.msra.mxu0 0.0
    %1228 = vmatprep.subr.mxu0 0.0
    %1229 = vmatpush1.xpose.msra.mxu0 0.0
    %1230 = vmatprep.subr.mxu0 0.0
    %1231 = vmatpush1.xpose.msra.mxu0 0.0
    %1232 = vmatprep.subr.mxu0 0.0
    %1233 = vmatpush1.xpose.msra.mxu0 0.0
    %1234 = vmatprep.subr.mxu0 0.0
    %1235 = vmatpush1.xpose.msra.mxu0 0.0
    %1236 = vmatprep.subr.mxu0 0.0
    %1237 = vmatpush1.xpose.msra.mxu0 0.0
    %1238 = vmatprep.subr.mxu0 0.0
    %1239 = vmatpush1.xpose.msra.mxu0 0.0
    %1240 = vmatprep.subr.mxu0 0.0
    %1241 = vmatpush1.xpose.msra.mxu0 0.0
    %1242 = vmatprep.subr.mxu0 0.0
    %1243 = vmatpush1.xpose.msra.mxu0 0.0
    %1244 = vmatprep.subr.mxu0 0.0
    %1245 = vmatpush1.xpose.msra.mxu0 0.0
    %1246 = vmatprep.subr.mxu0 0.0
    %1247 = vmatpush1.xpose.msra.mxu0 %v1216
    %1248 = vmatprep.subr.mxu0 0.0
    %1249 = vmatpush1.xpose.msra.mxu0 %v1214
    %1250 = vmatprep.subr.mxu0 0.0
    %1251 = vmatpush2.xpose.msra.mxu0 0.0
    %1252 = vmatprep.subr.mxu0 0.0
    %1253 = vmatpush2.xpose.msra.mxu0 0.0
    %1254 = vmatprep.subr.mxu0 0.0
    %1255 = vmatpush2.xpose.msra.mxu0 0.0
    %1256 = vmatprep.subr.mxu0 0.0
    %1257 = vmatpush2.xpose.msra.mxu0 0.0
    %1258 = vmatprep.subr.mxu0 0.0
    %1259 = vmatpush2.xpose.msra.mxu0 0.0
    %1260 = vmatprep.subr.mxu0 0.0
    %1261 = vmatpush2.xpose.msra.mxu0 0.0
    %1262 = vmatprep.subr.mxu0 0.0
    %1263 = vmatpush2.xpose.msra.mxu0 0.0
    %1264 = vmatprep.subr.mxu0 0.0
    %1265 = vmatpush2.xpose.msra.mxu0 0.0
    %1266 = vmatprep.subr.mxu0 0.0
    %1267 = vmatpush2.xpose.msra.mxu0 0.0
    %1268 = vmatprep.subr.mxu0 0.0
    %1269 = vmatpush2.xpose.msra.mxu0 0.0
    %1270 = vmatprep.subr.mxu0 0.0
    %1271 = vmatpush2.xpose.msra.mxu0 0.0
    %1272 = vmatprep.subr.mxu0 0.0
    %1273 = vmatpush2.xpose.msra.mxu0 0.0
    %1274 = vmatprep.subr.mxu0 0.0
    %1275 = vmatpush2.xpose.msra.mxu0 0.0
    %1276 = vmatprep.subr.mxu0 0.0
    %1277 = vmatpush2.xpose.msra.mxu0 0.0
    %1278 = vmatprep.subr.mxu0 0.0
    %1279 = vmatpush2.xpose.msra.mxu0 0.0
    %1280 = vmatprep.subr.mxu0 0.0
    %1281 = vmatpush2.xpose.msra.mxu0 0.0
    %1282 = vmatprep.mubr.f32.mxu0 0.0
    %1283 = vmatmul.mubr.f32.gmra.mxu0 %v1210
    %v1284 = vpop.f32.mrf.mxu0
    %v1285 = vadd.f32 %v1200, %v1284
    %v1286 = vpop.f32.mrf.mxu0
    %1287 = vmatprep.mubr.f32.mxu0 0.0
    %1288 = vmatmul.mubr.f32.gmra.mxu0 %v1212
    %v1289 = vpop.f32.mrf.mxu0
    %v1290 = vadd.f32 %v1201, %v1289
    %v1291 = vpop.f32.mrf.mxu0
    %1292 = vdwg.mxu0
    %1293 = vrot.lane.b32.xlu0 %v187, 112
    %v1294 = vpop.permute.xlu0 %1293
    %1295 = vrot.lane.b32.xlu0 %v192, 112
    %v1296 = vpop.permute.xlu0 %1295
    %1297 = vrot.lane.b32.xlu0 %v187, 80
    %v1298 = vpop.permute.xlu0 %1297
    %1299 = vrot.lane.b32.xlu0 %v192, 80
    %v1300 = vpop.permute.xlu0 %1299
    %v1301 = vsel %vm203, %v1294, 0
    %v1303 = vsel %vm203, %v1296, 0
    %v1305 = vsel %vm203, %v1298, 0
    %v1307 = vsel %vm203, %v1300, 0
    %1309 = vmatprep.subr.mxu0 0.0
    %1310 = vmatpush1.xpose.msra.mxu0 0.0
    %1311 = vmatprep.subr.mxu0 0.0
    %1312 = vmatpush1.xpose.msra.mxu0 0.0
    %1313 = vmatprep.subr.mxu0 0.0
    %1314 = vmatpush1.xpose.msra.mxu0 0.0
    %1315 = vmatprep.subr.mxu0 0.0
    %1316 = vmatpush1.xpose.msra.mxu0 0.0
    %1317 = vmatprep.subr.mxu0 0.0
    %1318 = vmatpush1.xpose.msra.mxu0 0.0
    %1319 = vmatprep.subr.mxu0 0.0
    %1320 = vmatpush1.xpose.msra.mxu0 0.0
    %1321 = vmatprep.subr.mxu0 0.0
    %1322 = vmatpush1.xpose.msra.mxu0 0.0
    %1323 = vmatprep.subr.mxu0 0.0
    %1324 = vmatpush1.xpose.msra.mxu0 0.0
    %1325 = vmatprep.subr.mxu0 0.0
    %1326 = vmatpush1.xpose.msra.mxu0 0.0
    %1327 = vmatprep.subr.mxu0 0.0
    %1328 = vmatpush1.xpose.msra.mxu0 0.0
    %1329 = vmatprep.subr.mxu0 0.0
    %1330 = vmatpush1.xpose.msra.mxu0 0.0
    %1331 = vmatprep.subr.mxu0 0.0
    %1332 = vmatpush1.xpose.msra.mxu0 0.0
    %1333 = vmatprep.subr.mxu0 0.0
    %1334 = vmatpush1.xpose.msra.mxu0 0.0
    %1335 = vmatprep.subr.mxu0 0.0
    %1336 = vmatpush1.xpose.msra.mxu0 0.0
    %1337 = vmatprep.subr.mxu0 0.0
    %1338 = vmatpush1.xpose.msra.mxu0 %v1307
    %1339 = vmatprep.subr.mxu0 0.0
    %1340 = vmatpush1.xpose.msra.mxu0 %v1305
    %1341 = vmatprep.subr.mxu0 0.0
    %1342 = vmatpush2.xpose.msra.mxu0 0.0
    %1343 = vmatprep.subr.mxu0 0.0
    %1344 = vmatpush2.xpose.msra.mxu0 0.0
    %1345 = vmatprep.subr.mxu0 0.0
    %1346 = vmatpush2.xpose.msra.mxu0 0.0
    %1347 = vmatprep.subr.mxu0 0.0
    %1348 = vmatpush2.xpose.msra.mxu0 0.0
    %1349 = vmatprep.subr.mxu0 0.0
    %1350 = vmatpush2.xpose.msra.mxu0 0.0
    %1351 = vmatprep.subr.mxu0 0.0
    %1352 = vmatpush2.xpose.msra.mxu0 0.0
    %1353 = vmatprep.subr.mxu0 0.0
    %1354 = vmatpush2.xpose.msra.mxu0 0.0
    %1355 = vmatprep.subr.mxu0 0.0
    %1356 = vmatpush2.xpose.msra.mxu0 0.0
    %1357 = vmatprep.subr.mxu0 0.0
    %1358 = vmatpush2.xpose.msra.mxu0 0.0
    %1359 = vmatprep.subr.mxu0 0.0
    %1360 = vmatpush2.xpose.msra.mxu0 0.0
    %1361 = vmatprep.subr.mxu0 0.0
    %1362 = vmatpush2.xpose.msra.mxu0 0.0
    %1363 = vmatprep.subr.mxu0 0.0
    %1364 = vmatpush2.xpose.msra.mxu0 0.0
    %1365 = vmatprep.subr.mxu0 0.0
    %1366 = vmatpush2.xpose.msra.mxu0 0.0
    %1367 = vmatprep.subr.mxu0 0.0
    %1368 = vmatpush2.xpose.msra.mxu0 0.0
    %1369 = vmatprep.subr.mxu0 0.0
    %1370 = vmatpush2.xpose.msra.mxu0 0.0
    %1371 = vmatprep.subr.mxu0 0.0
    %1372 = vmatpush2.xpose.msra.mxu0 0.0
    %1373 = vmatprep.mubr.f32.mxu0 0.0
    %1374 = vmatmul.mubr.f32.gmra.mxu0 %v1301
    %v1375 = vpop.f32.mrf.mxu0
    %v1376 = vadd.f32 %v1200, %v1375
    %v1377 = vpop.f32.mrf.mxu0
    %1378 = vmatprep.mubr.f32.mxu0 0.0
    %1379 = vmatmul.mubr.f32.gmra.mxu0 %v1303
    %v1380 = vpop.f32.mrf.mxu0
    %v1381 = vadd.f32 %v1201, %v1380
    %v1382 = vpop.f32.mrf.mxu0
    %1383 = vdwg.mxu0
    %v1384 = vsel %vm376, %v1285, -inf
    %1385 = vmax.xlane.f32.xlu0 %v1384
    %v1386 = vpop.xlane.xlu0 %1385
    %v1387 = vsel %vm376, %v1290, -inf
    %1388 = vmax.xlane.f32.xlu0 %v1387
    %v1389 = vpop.xlane.xlu0 %1388
    %v1390 = vsel %vm376, %v1376, -inf
    %1391 = vmax.xlane.f32.xlu0 %v1390
    %v1392 = vpop.xlane.xlu0 %1391
    %v1393 = vsel %vm376, %v1381, -inf
    %1394 = vmax.xlane.f32.xlu0 %v1393
    %v1395 = vpop.xlane.xlu0 %1394
    %v1396 = vsub.f32 %v1285, %v1386
    %v1397 = vsub.f32 %v1290, %v1389
    %v1398 = vsub.f32 %v1376, %v1392
    %v1399 = vsub.f32 %v1381, %v1395
    %v1400 = vmul.f32 %v1396, 1.442695
    %v1401 = vpow.pop %v1400
    %v1402 = vmul.f32 %v1397, 1.442695
    %v1403 = vpow.pop %v1402
    %v1404 = vmul.f32 %v1398, 1.442695
    %v1405 = vpow.pop %v1404
    %v1406 = vmul.f32 %v1399, 1.442695
    %v1407 = vpow.pop %v1406
    %v1408 = vsel %vm376, %v1401, 0.0
    %1409 = vadd.xlane.f32.xlu0 %v1408
    %v1410 = vpop.xlane.xlu0 %1409
    %v1411 = vsel %vm376, %v1403, 0.0
    %1412 = vadd.xlane.f32.xlu0 %v1411
    %v1413 = vpop.xlane.xlu0 %1412
    %v1414 = vsel %vm376, %v1405, 0.0
    %1415 = vadd.xlane.f32.xlu0 %v1414
    %v1416 = vpop.xlane.xlu0 %1415
    %v1417 = vsel %vm376, %v1407, 0.0
    %1418 = vadd.xlane.f32.xlu0 %v1417
    %v1419 = vpop.xlane.xlu0 %1418
    %v1420 = vrcp.pop %v1410
    %v1421 = vmul.f32 %v1401, %v1420
    %v1422 = vrcp.pop %v1413
    %v1423 = vmul.f32 %v1403, %v1422
    %v1424 = vrcp.pop %v1416
    %v1425 = vmul.f32 %v1405, %v1424
    %v1426 = vrcp.pop %v1419
    %v1427 = vmul.f32 %v1407, %v1426
    %v1428 = vadd.f32 %v827, %v1421
    %v1429 = vadd.f32 %v828, %v1425
    %1430 = vrot.lane.b32.xlu0 %v177, 48
    %v1431 = vpop.permute.xlu0 %1430
    %1432 = vrot.lane.b32.xlu0 %v182, 48
    %v1433 = vpop.permute.xlu0 %1432
    %v1437 = vsel %vm376, %v1421, 0
    %v1440 = vsel %vm376, %v1423, 0
    %1442 = vmatprep.subr.mxu0 0.0
    %1443 = vmatpush1.msra.mxu0 0.0
    %1444 = vmatprep.subr.mxu0 0.0
    %1445 = vmatpush1.msra.mxu0 0.0
    %1446 = vmatprep.subr.mxu0 0.0
    %1447 = vmatpush1.msra.mxu0 0.0
    %1448 = vmatprep.subr.mxu0 0.0
    %1449 = vmatpush1.msra.mxu0 0.0
    %1450 = vmatprep.subr.mxu0 0.0
    %1451 = vmatpush1.msra.mxu0 0.0
    %1452 = vmatprep.subr.mxu0 0.0
    %1453 = vmatpush1.msra.mxu0 0.0
    %1454 = vmatprep.subr.mxu0 0.0
    %1455 = vmatpush1.msra.mxu0 0.0
    %1456 = vmatprep.subr.mxu0 0.0
    %1457 = vmatpush1.msra.mxu0 0.0
    %1458 = vmatprep.subr.mxu0 0.0
    %1459 = vmatpush1.msra.mxu0 0.0
    %1460 = vmatprep.subr.mxu0 0.0
    %1461 = vmatpush1.msra.mxu0 0.0
    %1462 = vmatprep.subr.mxu0 0.0
    %1463 = vmatpush1.msra.mxu0 0.0
    %1464 = vmatprep.subr.mxu0 0.0
    %1465 = vmatpush1.msra.mxu0 0.0
    %1466 = vmatprep.subr.mxu0 0.0
    %1467 = vmatpush1.msra.mxu0 0.0
    %1468 = vmatprep.subr.mxu0 0.0
    %1469 = vmatpush1.msra.mxu0 0.0
    %1470 = vmatprep.subr.mxu0 0.0
    %1471 = vmatpush1.msra.mxu0 %v1433
    %1472 = vmatprep.subr.mxu0 0.0
    %1473 = vmatpush1.msra.mxu0 %v1431
    %1474 = vmatprep.subr.mxu0 0.0
    %1475 = vmatpush2.msra.mxu0 0.0
    %1476 = vmatprep.subr.mxu0 0.0
    %1477 = vmatpush2.msra.mxu0 0.0
    %1478 = vmatprep.subr.mxu0 0.0
    %1479 = vmatpush2.msra.mxu0 0.0
    %1480 = vmatprep.subr.mxu0 0.0
    %1481 = vmatpush2.msra.mxu0 0.0
    %1482 = vmatprep.subr.mxu0 0.0
    %1483 = vmatpush2.msra.mxu0 0.0
    %1484 = vmatprep.subr.mxu0 0.0
    %1485 = vmatpush2.msra.mxu0 0.0
    %1486 = vmatprep.subr.mxu0 0.0
    %1487 = vmatpush2.msra.mxu0 0.0
    %1488 = vmatprep.subr.mxu0 0.0
    %1489 = vmatpush2.msra.mxu0 0.0
    %1490 = vmatprep.subr.mxu0 0.0
    %1491 = vmatpush2.msra.mxu0 0.0
    %1492 = vmatprep.subr.mxu0 0.0
    %1493 = vmatpush2.msra.mxu0 0.0
    %1494 = vmatprep.subr.mxu0 0.0
    %1495 = vmatpush2.msra.mxu0 0.0
    %1496 = vmatprep.subr.mxu0 0.0
    %1497 = vmatpush2.msra.mxu0 0.0
    %1498 = vmatprep.subr.mxu0 0.0
    %1499 = vmatpush2.msra.mxu0 0.0
    %1500 = vmatprep.subr.mxu0 0.0
    %1501 = vmatpush2.msra.mxu0 0.0
    %1502 = vmatprep.subr.mxu0 0.0
    %1503 = vmatpush2.msra.mxu0 0.0
    %1504 = vmatprep.subr.mxu0 0.0
    %1505 = vmatpush2.msra.mxu0 0.0
    %1506 = vmatprep.mubr.f32.mxu0 0.0
    %1507 = vmatmul.mubr.f32.gmra.mxu0 %v1437
    %v1508 = vpop.f32.mrf.mxu0
    %v1509 = vadd.f32 0.0, %v1508
    %v1510 = vpop.f32.mrf.mxu0
    %1511 = vmatprep.mubr.f32.mxu0 0.0
    %1512 = vmatmul.mubr.f32.gmra.mxu0 %v1440
    %v1513 = vpop.f32.mrf.mxu0
    %v1514 = vadd.f32 0.0, %v1513
    %v1515 = vpop.f32.mrf.mxu0
    %1516 = vdwg.mxu0
    %1517 = vrot.lane.b32.xlu0 %v187, 48
    %v1518 = vpop.permute.xlu0 %1517
    %1519 = vrot.lane.b32.xlu0 %v192, 48
    %v1520 = vpop.permute.xlu0 %1519
    %v1524 = vsel %vm376, %v1425, 0
    %v1527 = vsel %vm376, %v1427, 0
    %1529 = vmatprep.subr.mxu0 0.0
    %1530 = vmatpush1.msra.mxu0 0.0
    %1531 = vmatprep.subr.mxu0 0.0
    %1532 = vmatpush1.msra.mxu0 0.0
    %1533 = vmatprep.subr.mxu0 0.0
    %1534 = vmatpush1.msra.mxu0 0.0
    %1535 = vmatprep.subr.mxu0 0.0
    %1536 = vmatpush1.msra.mxu0 0.0
    %1537 = vmatprep.subr.mxu0 0.0
    %1538 = vmatpush1.msra.mxu0 0.0
    %1539 = vmatprep.subr.mxu0 0.0
    %1540 = vmatpush1.msra.mxu0 0.0
    %1541 = vmatprep.subr.mxu0 0.0
    %1542 = vmatpush1.msra.mxu0 0.0
    %1543 = vmatprep.subr.mxu0 0.0
    %1544 = vmatpush1.msra.mxu0 0.0
    %1545 = vmatprep.subr.mxu0 0.0
    %1546 = vmatpush1.msra.mxu0 0.0
    %1547 = vmatprep.subr.mxu0 0.0
    %1548 = vmatpush1.msra.mxu0 0.0
    %1549 = vmatprep.subr.mxu0 0.0
    %1550 = vmatpush1.msra.mxu0 0.0
    %1551 = vmatprep.subr.mxu0 0.0
    %1552 = vmatpush1.msra.mxu0 0.0
    %1553 = vmatprep.subr.mxu0 0.0
    %1554 = vmatpush1.msra.mxu0 0.0
    %1555 = vmatprep.subr.mxu0 0.0
    %1556 = vmatpush1.msra.mxu0 0.0
    %1557 = vmatprep.subr.mxu0 0.0
    %1558 = vmatpush1.msra.mxu0 %v1520
    %1559 = vmatprep.subr.mxu0 0.0
    %1560 = vmatpush1.msra.mxu0 %v1518
    %1561 = vmatprep.subr.mxu0 0.0
    %1562 = vmatpush2.msra.mxu0 0.0
    %1563 = vmatprep.subr.mxu0 0.0
    %1564 = vmatpush2.msra.mxu0 0.0
    %1565 = vmatprep.subr.mxu0 0.0
    %1566 = vmatpush2.msra.mxu0 0.0
    %1567 = vmatprep.subr.mxu0 0.0
    %1568 = vmatpush2.msra.mxu0 0.0
    %1569 = vmatprep.subr.mxu0 0.0
    %1570 = vmatpush2.msra.mxu0 0.0
    %1571 = vmatprep.subr.mxu0 0.0
    %1572 = vmatpush2.msra.mxu0 0.0
    %1573 = vmatprep.subr.mxu0 0.0
    %1574 = vmatpush2.msra.mxu0 0.0
    %1575 = vmatprep.subr.mxu0 0.0
    %1576 = vmatpush2.msra.mxu0 0.0
    %1577 = vmatprep.subr.mxu0 0.0
    %1578 = vmatpush2.msra.mxu0 0.0
    %1579 = vmatprep.subr.mxu0 0.0
    %1580 = vmatpush2.msra.mxu0 0.0
    %1581 = vmatprep.subr.mxu0 0.0
    %1582 = vmatpush2.msra.mxu0 0.0
    %1583 = vmatprep.subr.mxu0 0.0
    %1584 = vmatpush2.msra.mxu0 0.0
    %1585 = vmatprep.subr.mxu0 0.0
    %1586 = vmatpush2.msra.mxu0 0.0
    %1587 = vmatprep.subr.mxu0 0.0
    %1588 = vmatpush2.msra.mxu0 0.0
    %1589 = vmatprep.subr.mxu0 0.0
    %1590 = vmatpush2.msra.mxu0 0.0
    %1591 = vmatprep.subr.mxu0 0.0
    %1592 = vmatpush2.msra.mxu0 0.0
    %1593 = vmatprep.mubr.f32.mxu0 0.0
    %1594 = vmatmul.mubr.f32.gmra.mxu0 %v1524
    %v1595 = vpop.f32.mrf.mxu0
    %v1596 = vadd.f32 0.0, %v1595
    %v1597 = vpop.f32.mrf.mxu0
    %1598 = vmatprep.mubr.f32.mxu0 0.0
    %1599 = vmatmul.mubr.f32.gmra.mxu0 %v1527
    %v1600 = vpop.f32.mrf.mxu0
    %v1601 = vadd.f32 0.0, %v1600
    %v1602 = vpop.f32.mrf.mxu0
    %1603 = vdwg.mxu0
    %s1604 = scalar_lea.vmem [#allocation7], 16
    %v1605 = vld [vmem:[%s1604] sm:$0xff]
    %v1607 = vsel %vm203, %v1509, 0
    %v1610 = vsel %vm203, %v1514, 0
    %v1613 = vsel %vm203, %v1596, 0
    %v1616 = vsel %vm203, %v1601, 0
    %1618 = vmatprep.subr.mxu0 0.0
    %1619 = vmatpush1.msra.mxu0 0.0
    %1620 = vmatprep.subr.mxu0 0.0
    %1621 = vmatpush1.msra.mxu0 0.0
    %1622 = vmatprep.subr.mxu0 0.0
    %1623 = vmatpush1.msra.mxu0 0.0
    %1624 = vmatprep.subr.mxu0 0.0
    %1625 = vmatpush1.msra.mxu0 0.0
    %1626 = vmatprep.subr.mxu0 0.0
    %1627 = vmatpush1.msra.mxu0 0.0
    %1628 = vmatprep.subr.mxu0 0.0
    %1629 = vmatpush1.msra.mxu0 0.0
    %1630 = vmatprep.subr.mxu0 0.0
    %1631 = vmatpush1.msra.mxu0 0.0
    %1632 = vmatprep.subr.mxu0 0.0
    %1633 = vmatpush1.msra.mxu0 0.0
    %1634 = vmatprep.subr.mxu0 0.0
    %1635 = vmatpush1.msra.mxu0 0.0
    %1636 = vmatprep.subr.mxu0 0.0
    %1637 = vmatpush1.msra.mxu0 0.0
    %1638 = vmatprep.subr.mxu0 0.0
    %1639 = vmatpush1.msra.mxu0 0.0
    %1640 = vmatprep.subr.mxu0 0.0
    %1641 = vmatpush1.msra.mxu0 0.0
    %1642 = vmatprep.subr.mxu0 0.0
    %1643 = vmatpush1.msra.mxu0 0.0
    %1644 = vmatprep.subr.mxu0 0.0
    %1645 = vmatpush1.msra.mxu0 0.0
    %1646 = vmatprep.subr.mxu0 0.0
    %1647 = vmatpush1.msra.mxu0 0.0
    %1648 = vmatprep.subr.mxu0 0.0
    %1649 = vmatpush1.msra.mxu0 %v1605
    %1650 = vmatprep.subr.mxu0 0.0
    %1651 = vmatpush2.msra.mxu0 0.0
    %1652 = vmatprep.subr.mxu0 0.0
    %1653 = vmatpush2.msra.mxu0 0.0
    %1654 = vmatprep.subr.mxu0 0.0
    %1655 = vmatpush2.msra.mxu0 0.0
    %1656 = vmatprep.subr.mxu0 0.0
    %1657 = vmatpush2.msra.mxu0 0.0
    %1658 = vmatprep.subr.mxu0 0.0
    %1659 = vmatpush2.msra.mxu0 0.0
    %1660 = vmatprep.subr.mxu0 0.0
    %1661 = vmatpush2.msra.mxu0 0.0
    %1662 = vmatprep.subr.mxu0 0.0
    %1663 = vmatpush2.msra.mxu0 0.0
    %1664 = vmatprep.subr.mxu0 0.0
    %1665 = vmatpush2.msra.mxu0 0.0
    %1666 = vmatprep.subr.mxu0 0.0
    %1667 = vmatpush2.msra.mxu0 0.0
    %1668 = vmatprep.subr.mxu0 0.0
    %1669 = vmatpush2.msra.mxu0 0.0
    %1670 = vmatprep.subr.mxu0 0.0
    %1671 = vmatpush2.msra.mxu0 0.0
    %1672 = vmatprep.subr.mxu0 0.0
    %1673 = vmatpush2.msra.mxu0 0.0
    %1674 = vmatprep.subr.mxu0 0.0
    %1675 = vmatpush2.msra.mxu0 0.0
    %1676 = vmatprep.subr.mxu0 0.0
    %1677 = vmatpush2.msra.mxu0 0.0
    %1678 = vmatprep.subr.mxu0 0.0
    %1679 = vmatpush2.msra.mxu0 0.0
    %1680 = vmatprep.subr.mxu0 0.0
    %1681 = vmatpush2.msra.mxu0 0.0
    %1682 = vmatprep.mubr.f32.mxu0 0.0
    %1683 = vmatmul.mubr.f32.gmra.mxu0 %v1607
    %v1684 = vpop.f32.mrf.mxu0
    %v1685 = vadd.f32 0.0, %v1684
    %v1686 = vpop.f32.mrf.mxu0
    %1687 = vmatprep.mubr.f32.mxu0 0.0
    %1688 = vmatmul.mubr.f32.gmra.mxu0 %v1610
    %v1689 = vpop.f32.mrf.mxu0
    %v1690 = vadd.f32 0.0, %v1689
    %v1691 = vpop.f32.mrf.mxu0
    %1692 = vmatprep.mubr.f32.mxu0 0.0
    %1693 = vmatmul.mubr.f32.gmra.mxu0 %v1613
    %v1694 = vpop.f32.mrf.mxu0
    %v1695 = vadd.f32 0.0, %v1694
    %v1696 = vpop.f32.mrf.mxu0
    %1697 = vmatprep.mubr.f32.mxu0 0.0
    %1698 = vmatmul.mubr.f32.gmra.mxu0 %v1616
    %v1699 = vpop.f32.mrf.mxu0
    %v1700 = vadd.f32 0.0, %v1699
    %v1701 = vpop.f32.mrf.mxu0
    %1702 = vdwg.mxu0
    %v1703 = vadd.f32 %v1181, %v1685
    %v1704 = vadd.f32 %v1186, %v1690
    %v1705 = vadd.f32 %v1191, %v1695
    %v1706 = vadd.f32 %v1196, %v1700
    %s1707 = scalar_lea.vmem [#allocation8], 48
    %v1708 = vld [vmem:[%s1707] sm:$0xff]
    %v1709 = vld [vmem:[%s1707 + $0x8] sm:$0xff]
    %1710 = vrot.lane.b32.xlu0 %v177, 104
    %v1711 = vpop.permute.xlu0 %1710
    %1712 = vrot.lane.b32.xlu0 %v182, 104
    %v1713 = vpop.permute.xlu0 %1712
    %1714 = vrot.lane.b32.xlu0 %v177, 72
    %v1715 = vpop.permute.xlu0 %1714
    %1716 = vrot.lane.b32.xlu0 %v182, 72
    %v1717 = vpop.permute.xlu0 %1716
    %v1718 = vsel %vm203, %v1711, 0
    %v1720 = vsel %vm203, %v1713, 0
    %v1722 = vsel %vm203, %v1715, 0
    %v1724 = vsel %vm203, %v1717, 0
    %1726 = vmatprep.subr.mxu0 0.0
    %1727 = vmatpush1.xpose.msra.mxu0 0.0
    %1728 = vmatprep.subr.mxu0 0.0
    %1729 = vmatpush1.xpose.msra.mxu0 0.0
    %1730 = vmatprep.subr.mxu0 0.0
    %1731 = vmatpush1.xpose.msra.mxu0 0.0
    %1732 = vmatprep.subr.mxu0 0.0
    %1733 = vmatpush1.xpose.msra.mxu0 0.0
    %1734 = vmatprep.subr.mxu0 0.0
    %1735 = vmatpush1.xpose.msra.mxu0 0.0
    %1736 = vmatprep.subr.mxu0 0.0
    %1737 = vmatpush1.xpose.msra.mxu0 0.0
    %1738 = vmatprep.subr.mxu0 0.0
    %1739 = vmatpush1.xpose.msra.mxu0 0.0
    %1740 = vmatprep.subr.mxu0 0.0
    %1741 = vmatpush1.xpose.msra.mxu0 0.0
    %1742 = vmatprep.subr.mxu0 0.0
    %1743 = vmatpush1.xpose.msra.mxu0 0.0
    %1744 = vmatprep.subr.mxu0 0.0
    %1745 = vmatpush1.xpose.msra.mxu0 0.0
    %1746 = vmatprep.subr.mxu0 0.0
    %1747 = vmatpush1.xpose.msra.mxu0 0.0
    %1748 = vmatprep.subr.mxu0 0.0
    %1749 = vmatpush1.xpose.msra.mxu0 0.0
    %1750 = vmatprep.subr.mxu0 0.0
    %1751 = vmatpush1.xpose.msra.mxu0 0.0
    %1752 = vmatprep.subr.mxu0 0.0
    %1753 = vmatpush1.xpose.msra.mxu0 0.0
    %1754 = vmatprep.subr.mxu0 0.0
    %1755 = vmatpush1.xpose.msra.mxu0 %v1724
    %1756 = vmatprep.subr.mxu0 0.0
    %1757 = vmatpush1.xpose.msra.mxu0 %v1722
    %1758 = vmatprep.subr.mxu0 0.0
    %1759 = vmatpush2.xpose.msra.mxu0 0.0
    %1760 = vmatprep.subr.mxu0 0.0
    %1761 = vmatpush2.xpose.msra.mxu0 0.0
    %1762 = vmatprep.subr.mxu0 0.0
    %1763 = vmatpush2.xpose.msra.mxu0 0.0
    %1764 = vmatprep.subr.mxu0 0.0
    %1765 = vmatpush2.xpose.msra.mxu0 0.0
    %1766 = vmatprep.subr.mxu0 0.0
    %1767 = vmatpush2.xpose.msra.mxu0 0.0
    %1768 = vmatprep.subr.mxu0 0.0
    %1769 = vmatpush2.xpose.msra.mxu0 0.0
    %1770 = vmatprep.subr.mxu0 0.0
    %1771 = vmatpush2.xpose.msra.mxu0 0.0
    %1772 = vmatprep.subr.mxu0 0.0
    %1773 = vmatpush2.xpose.msra.mxu0 0.0
    %1774 = vmatprep.subr.mxu0 0.0
    %1775 = vmatpush2.xpose.msra.mxu0 0.0
    %1776 = vmatprep.subr.mxu0 0.0
    %1777 = vmatpush2.xpose.msra.mxu0 0.0
    %1778 = vmatprep.subr.mxu0 0.0
    %1779 = vmatpush2.xpose.msra.mxu0 0.0
    %1780 = vmatprep.subr.mxu0 0.0
    %1781 = vmatpush2.xpose.msra.mxu0 0.0
    %1782 = vmatprep.subr.mxu0 0.0
    %1783 = vmatpush2.xpose.msra.mxu0 0.0
    %1784 = vmatprep.subr.mxu0 0.0
    %1785 = vmatpush2.xpose.msra.mxu0 0.0
    %1786 = vmatprep.subr.mxu0 0.0
    %1787 = vmatpush2.xpose.msra.mxu0 0.0
    %1788 = vmatprep.subr.mxu0 0.0
    %1789 = vmatpush2.xpose.msra.mxu0 0.0
    %1790 = vmatprep.mubr.f32.mxu0 0.0
    %1791 = vmatmul.mubr.f32.gmra.mxu0 %v1718
    %v1792 = vpop.f32.mrf.mxu0
    %v1793 = vadd.f32 %v1708, %v1792
    %v1794 = vpop.f32.mrf.mxu0
    %1795 = vmatprep.mubr.f32.mxu0 0.0
    %1796 = vmatmul.mubr.f32.gmra.mxu0 %v1720
    %v1797 = vpop.f32.mrf.mxu0
    %v1798 = vadd.f32 %v1709, %v1797
    %v1799 = vpop.f32.mrf.mxu0
    %1800 = vdwg.mxu0
    %1801 = vrot.lane.b32.xlu0 %v187, 104
    %v1802 = vpop.permute.xlu0 %1801
    %1803 = vrot.lane.b32.xlu0 %v192, 104
    %v1804 = vpop.permute.xlu0 %1803
    %1805 = vrot.lane.b32.xlu0 %v187, 72
    %v1806 = vpop.permute.xlu0 %1805
    %1807 = vrot.lane.b32.xlu0 %v192, 72
    %v1808 = vpop.permute.xlu0 %1807
    %v1809 = vsel %vm203, %v1802, 0
    %v1811 = vsel %vm203, %v1804, 0
    %v1813 = vsel %vm203, %v1806, 0
    %v1815 = vsel %vm203, %v1808, 0
    %1817 = vmatprep.subr.mxu0 0.0
    %1818 = vmatpush1.xpose.msra.mxu0 0.0
    %1819 = vmatprep.subr.mxu0 0.0
    %1820 = vmatpush1.xpose.msra.mxu0 0.0
    %1821 = vmatprep.subr.mxu0 0.0
    %1822 = vmatpush1.xpose.msra.mxu0 0.0
    %1823 = vmatprep.subr.mxu0 0.0
    %1824 = vmatpush1.xpose.msra.mxu0 0.0
    %1825 = vmatprep.subr.mxu0 0.0
    %1826 = vmatpush1.xpose.msra.mxu0 0.0
    %1827 = vmatprep.subr.mxu0 0.0
    %1828 = vmatpush1.xpose.msra.mxu0 0.0
    %1829 = vmatprep.subr.mxu0 0.0
    %1830 = vmatpush1.xpose.msra.mxu0 0.0
    %1831 = vmatprep.subr.mxu0 0.0
    %1832 = vmatpush1.xpose.msra.mxu0 0.0
    %1833 = vmatprep.subr.mxu0 0.0
    %1834 = vmatpush1.xpose.msra.mxu0 0.0
    %1835 = vmatprep.subr.mxu0 0.0
    %1836 = vmatpush1.xpose.msra.mxu0 0.0
    %1837 = vmatprep.subr.mxu0 0.0
    %1838 = vmatpush1.xpose.msra.mxu0 0.0
    %1839 = vmatprep.subr.mxu0 0.0
    %1840 = vmatpush1.xpose.msra.mxu0 0.0
    %1841 = vmatprep.subr.mxu0 0.0
    %1842 = vmatpush1.xpose.msra.mxu0 0.0
    %1843 = vmatprep.subr.mxu0 0.0
    %1844 = vmatpush1.xpose.msra.mxu0 0.0
    %1845 = vmatprep.subr.mxu0 0.0
    %1846 = vmatpush1.xpose.msra.mxu0 %v1815
    %1847 = vmatprep.subr.mxu0 0.0
    %1848 = vmatpush1.xpose.msra.mxu0 %v1813
    %1849 = vmatprep.subr.mxu0 0.0
    %1850 = vmatpush2.xpose.msra.mxu0 0.0
    %1851 = vmatprep.subr.mxu0 0.0
    %1852 = vmatpush2.xpose.msra.mxu0 0.0
    %1853 = vmatprep.subr.mxu0 0.0
    %1854 = vmatpush2.xpose.msra.mxu0 0.0
    %1855 = vmatprep.subr.mxu0 0.0
    %1856 = vmatpush2.xpose.msra.mxu0 0.0
    %1857 = vmatprep.subr.mxu0 0.0
    %1858 = vmatpush2.xpose.msra.mxu0 0.0
    %1859 = vmatprep.subr.mxu0 0.0
    %1860 = vmatpush2.xpose.msra.mxu0 0.0
    %1861 = vmatprep.subr.mxu0 0.0
    %1862 = vmatpush2.xpose.msra.mxu0 0.0
    %1863 = vmatprep.subr.mxu0 0.0
    %1864 = vmatpush2.xpose.msra.mxu0 0.0
    %1865 = vmatprep.subr.mxu0 0.0
    %1866 = vmatpush2.xpose.msra.mxu0 0.0
    %1867 = vmatprep.subr.mxu0 0.0
    %1868 = vmatpush2.xpose.msra.mxu0 0.0
    %1869 = vmatprep.subr.mxu0 0.0
    %1870 = vmatpush2.xpose.msra.mxu0 0.0
    %1871 = vmatprep.subr.mxu0 0.0
    %1872 = vmatpush2.xpose.msra.mxu0 0.0
    %1873 = vmatprep.subr.mxu0 0.0
    %1874 = vmatpush2.xpose.msra.mxu0 0.0
    %1875 = vmatprep.subr.mxu0 0.0
    %1876 = vmatpush2.xpose.msra.mxu0 0.0
    %1877 = vmatprep.subr.mxu0 0.0
    %1878 = vmatpush2.xpose.msra.mxu0 0.0
    %1879 = vmatprep.subr.mxu0 0.0
    %1880 = vmatpush2.xpose.msra.mxu0 0.0
    %1881 = vmatprep.mubr.f32.mxu0 0.0
    %1882 = vmatmul.mubr.f32.gmra.mxu0 %v1809
    %v1883 = vpop.f32.mrf.mxu0
    %v1884 = vadd.f32 %v1708, %v1883
    %v1885 = vpop.f32.mrf.mxu0
    %1886 = vmatprep.mubr.f32.mxu0 0.0
    %1887 = vmatmul.mubr.f32.gmra.mxu0 %v1811
    %v1888 = vpop.f32.mrf.mxu0
    %v1889 = vadd.f32 %v1709, %v1888
    %v1890 = vpop.f32.mrf.mxu0
    %1891 = vdwg.mxu0
    %v1892 = vsel %vm376, %v1793, -inf
    %1893 = vmax.xlane.f32.xlu0 %v1892
    %v1894 = vpop.xlane.xlu0 %1893
    %v1895 = vsel %vm376, %v1798, -inf
    %1896 = vmax.xlane.f32.xlu0 %v1895
    %v1897 = vpop.xlane.xlu0 %1896
    %v1898 = vsel %vm376, %v1884, -inf
    %1899 = vmax.xlane.f32.xlu0 %v1898
    %v1900 = vpop.xlane.xlu0 %1899
    %v1901 = vsel %vm376, %v1889, -inf
    %1902 = vmax.xlane.f32.xlu0 %v1901
    %v1903 = vpop.xlane.xlu0 %1902
    %v1904 = vsub.f32 %v1793, %v1894
    %v1905 = vsub.f32 %v1798, %v1897
    %v1906 = vsub.f32 %v1884, %v1900
    %v1907 = vsub.f32 %v1889, %v1903
    %v1908 = vmul.f32 %v1904, 1.442695
    %v1909 = vpow.pop %v1908
    %v1910 = vmul.f32 %v1905, 1.442695
    %v1911 = vpow.pop %v1910
    %v1912 = vmul.f32 %v1906, 1.442695
    %v1913 = vpow.pop %v1912
    %v1914 = vmul.f32 %v1907, 1.442695
    %v1915 = vpow.pop %v1914
    %v1916 = vsel %vm376, %v1909, 0.0
    %1917 = vadd.xlane.f32.xlu0 %v1916
    %v1918 = vpop.xlane.xlu0 %1917
    %v1919 = vsel %vm376, %v1911, 0.0
    %1920 = vadd.xlane.f32.xlu0 %v1919
    %v1921 = vpop.xlane.xlu0 %1920
    %v1922 = vsel %vm376, %v1913, 0.0
    %1923 = vadd.xlane.f32.xlu0 %v1922
    %v1924 = vpop.xlane.xlu0 %1923
    %v1925 = vsel %vm376, %v1915, 0.0
    %1926 = vadd.xlane.f32.xlu0 %v1925
    %v1927 = vpop.xlane.xlu0 %1926
    %v1928 = vrcp.pop %v1918
    %v1929 = vmul.f32 %v1909, %v1928
    %v1930 = vrcp.pop %v1921
    %v1931 = vmul.f32 %v1911, %v1930
    %v1932 = vrcp.pop %v1924
    %v1933 = vmul.f32 %v1913, %v1932
    %v1934 = vrcp.pop %v1927
    %v1935 = vmul.f32 %v1915, %v1934
    %v1936 = vadd.f32 %v1428, %v1929
    %v1937 = vadd.f32 %v1429, %v1933
    %1938 = vrot.lane.b32.xlu0 %v177, 40
    %v1939 = vpop.permute.xlu0 %1938
    %1940 = vrot.lane.b32.xlu0 %v182, 40
    %v1941 = vpop.permute.xlu0 %1940
    %v1945 = vsel %vm376, %v1929, 0
    %v1948 = vsel %vm376, %v1931, 0
    %1950 = vmatprep.subr.mxu0 0.0
    %1951 = vmatpush1.msra.mxu0 0.0
    %1952 = vmatprep.subr.mxu0 0.0
    %1953 = vmatpush1.msra.mxu0 0.0
    %1954 = vmatprep.subr.mxu0 0.0
    %1955 = vmatpush1.msra.mxu0 0.0
    %1956 = vmatprep.subr.mxu0 0.0
    %1957 = vmatpush1.msra.mxu0 0.0
    %1958 = vmatprep.subr.mxu0 0.0
    %1959 = vmatpush1.msra.mxu0 0.0
    %1960 = vmatprep.subr.mxu0 0.0
    %1961 = vmatpush1.msra.mxu0 0.0
    %1962 = vmatprep.subr.mxu0 0.0
    %1963 = vmatpush1.msra.mxu0 0.0
    %1964 = vmatprep.subr.mxu0 0.0
    %1965 = vmatpush1.msra.mxu0 0.0
    %1966 = vmatprep.subr.mxu0 0.0
    %1967 = vmatpush1.msra.mxu0 0.0
    %1968 = vmatprep.subr.mxu0 0.0
    %1969 = vmatpush1.msra.mxu0 0.0
    %1970 = vmatprep.subr.mxu0 0.0
    %1971 = vmatpush1.msra.mxu0 0.0
    %1972 = vmatprep.subr.mxu0 0.0
    %1973 = vmatpush1.msra.mxu0 0.0
    %1974 = vmatprep.subr.mxu0 0.0
    %1975 = vmatpush1.msra.mxu0 0.0
    %1976 = vmatprep.subr.mxu0 0.0
    %1977 = vmatpush1.msra.mxu0 0.0
    %1978 = vmatprep.subr.mxu0 0.0
    %1979 = vmatpush1.msra.mxu0 %v1941
    %1980 = vmatprep.subr.mxu0 0.0
    %1981 = vmatpush1.msra.mxu0 %v1939
    %1982 = vmatprep.subr.mxu0 0.0
    %1983 = vmatpush2.msra.mxu0 0.0
    %1984 = vmatprep.subr.mxu0 0.0
    %1985 = vmatpush2.msra.mxu0 0.0
    %1986 = vmatprep.subr.mxu0 0.0
    %1987 = vmatpush2.msra.mxu0 0.0
    %1988 = vmatprep.subr.mxu0 0.0
    %1989 = vmatpush2.msra.mxu0 0.0
    %1990 = vmatprep.subr.mxu0 0.0
    %1991 = vmatpush2.msra.mxu0 0.0
    %1992 = vmatprep.subr.mxu0 0.0
    %1993 = vmatpush2.msra.mxu0 0.0
    %1994 = vmatprep.subr.mxu0 0.0
    %1995 = vmatpush2.msra.mxu0 0.0
    %1996 = vmatprep.subr.mxu0 0.0
    %1997 = vmatpush2.msra.mxu0 0.0
    %1998 = vmatprep.subr.mxu0 0.0
    %1999 = vmatpush2.msra.mxu0 0.0
    %2000 = vmatprep.subr.mxu0 0.0
    %2001 = vmatpush2.msra.mxu0 0.0
    %2002 = vmatprep.subr.mxu0 0.0
    %2003 = vmatpush2.msra.mxu0 0.0
    %2004 = vmatprep.subr.mxu0 0.0
    %2005 = vmatpush2.msra.mxu0 0.0
    %2006 = vmatprep.subr.mxu0 0.0
    %2007 = vmatpush2.msra.mxu0 0.0
    %2008 = vmatprep.subr.mxu0 0.0
    %2009 = vmatpush2.msra.mxu0 0.0
    %2010 = vmatprep.subr.mxu0 0.0
    %2011 = vmatpush2.msra.mxu0 0.0
    %2012 = vmatprep.subr.mxu0 0.0
    %2013 = vmatpush2.msra.mxu0 0.0
    %2014 = vmatprep.mubr.f32.mxu0 0.0
    %2015 = vmatmul.mubr.f32.gmra.mxu0 %v1945
    %v2016 = vpop.f32.mrf.mxu0
    %v2017 = vadd.f32 0.0, %v2016
    %v2018 = vpop.f32.mrf.mxu0
    %2019 = vmatprep.mubr.f32.mxu0 0.0
    %2020 = vmatmul.mubr.f32.gmra.mxu0 %v1948
    %v2021 = vpop.f32.mrf.mxu0
    %v2022 = vadd.f32 0.0, %v2021
    %v2023 = vpop.f32.mrf.mxu0
    %2024 = vdwg.mxu0
    %2025 = vrot.lane.b32.xlu0 %v187, 40
    %v2026 = vpop.permute.xlu0 %2025
    %2027 = vrot.lane.b32.xlu0 %v192, 40
    %v2028 = vpop.permute.xlu0 %2027
    %v2032 = vsel %vm376, %v1933, 0
    %v2035 = vsel %vm376, %v1935, 0
    %2037 = vmatprep.subr.mxu0 0.0
    %2038 = vmatpush1.msra.mxu0 0.0
    %2039 = vmatprep.subr.mxu0 0.0
    %2040 = vmatpush1.msra.mxu0 0.0
    %2041 = vmatprep.subr.mxu0 0.0
    %2042 = vmatpush1.msra.mxu0 0.0
    %2043 = vmatprep.subr.mxu0 0.0
    %2044 = vmatpush1.msra.mxu0 0.0
    %2045 = vmatprep.subr.mxu0 0.0
    %2046 = vmatpush1.msra.mxu0 0.0
    %2047 = vmatprep.subr.mxu0 0.0
    %2048 = vmatpush1.msra.mxu0 0.0
    %2049 = vmatprep.subr.mxu0 0.0
    %2050 = vmatpush1.msra.mxu0 0.0
    %2051 = vmatprep.subr.mxu0 0.0
    %2052 = vmatpush1.msra.mxu0 0.0
    %2053 = vmatprep.subr.mxu0 0.0
    %2054 = vmatpush1.msra.mxu0 0.0
    %2055 = vmatprep.subr.mxu0 0.0
    %2056 = vmatpush1.msra.mxu0 0.0
    %2057 = vmatprep.subr.mxu0 0.0
    %2058 = vmatpush1.msra.mxu0 0.0
    %2059 = vmatprep.subr.mxu0 0.0
    %2060 = vmatpush1.msra.mxu0 0.0
    %2061 = vmatprep.subr.mxu0 0.0
    %2062 = vmatpush1.msra.mxu0 0.0
    %2063 = vmatprep.subr.mxu0 0.0
    %2064 = vmatpush1.msra.mxu0 0.0
    %2065 = vmatprep.subr.mxu0 0.0
    %2066 = vmatpush1.msra.mxu0 %v2028
    %2067 = vmatprep.subr.mxu0 0.0
    %2068 = vmatpush1.msra.mxu0 %v2026
    %2069 = vmatprep.subr.mxu0 0.0
    %2070 = vmatpush2.msra.mxu0 0.0
    %2071 = vmatprep.subr.mxu0 0.0
    %2072 = vmatpush2.msra.mxu0 0.0
    %2073 = vmatprep.subr.mxu0 0.0
    %2074 = vmatpush2.msra.mxu0 0.0
    %2075 = vmatprep.subr.mxu0 0.0
    %2076 = vmatpush2.msra.mxu0 0.0
    %2077 = vmatprep.subr.mxu0 0.0
    %2078 = vmatpush2.msra.mxu0 0.0
    %2079 = vmatprep.subr.mxu0 0.0
    %2080 = vmatpush2.msra.mxu0 0.0
    %2081 = vmatprep.subr.mxu0 0.0
    %2082 = vmatpush2.msra.mxu0 0.0
    %2083 = vmatprep.subr.mxu0 0.0
    %2084 = vmatpush2.msra.mxu0 0.0
    %2085 = vmatprep.subr.mxu0 0.0
    %2086 = vmatpush2.msra.mxu0 0.0
    %2087 = vmatprep.subr.mxu0 0.0
    %2088 = vmatpush2.msra.mxu0 0.0
    %2089 = vmatprep.subr.mxu0 0.0
    %2090 = vmatpush2.msra.mxu0 0.0
    %2091 = vmatprep.subr.mxu0 0.0
    %2092 = vmatpush2.msra.mxu0 0.0
    %2093 = vmatprep.subr.mxu0 0.0
    %2094 = vmatpush2.msra.mxu0 0.0
    %2095 = vmatprep.subr.mxu0 0.0
    %2096 = vmatpush2.msra.mxu0 0.0
    %2097 = vmatprep.subr.mxu0 0.0
    %2098 = vmatpush2.msra.mxu0 0.0
    %2099 = vmatprep.subr.mxu0 0.0
    %2100 = vmatpush2.msra.mxu0 0.0
    %2101 = vmatprep.mubr.f32.mxu0 0.0
    %2102 = vmatmul.mubr.f32.gmra.mxu0 %v2032
    %v2103 = vpop.f32.mrf.mxu0
    %v2104 = vadd.f32 0.0, %v2103
    %v2105 = vpop.f32.mrf.mxu0
    %2106 = vmatprep.mubr.f32.mxu0 0.0
    %2107 = vmatmul.mubr.f32.gmra.mxu0 %v2035
    %v2108 = vpop.f32.mrf.mxu0
    %v2109 = vadd.f32 0.0, %v2108
    %v2110 = vpop.f32.mrf.mxu0
    %2111 = vdwg.mxu0
    %s2112 = scalar_lea.vmem [#allocation7], 24
    %v2113 = vld [vmem:[%s2112] sm:$0xff]
    %v2115 = vsel %vm203, %v2017, 0
    %v2118 = vsel %vm203, %v2022, 0
    %v2121 = vsel %vm203, %v2104, 0
    %v2124 = vsel %vm203, %v2109, 0
    %2126 = vmatprep.subr.mxu0 0.0
    %2127 = vmatpush1.msra.mxu0 0.0
    %2128 = vmatprep.subr.mxu0 0.0
    %2129 = vmatpush1.msra.mxu0 0.0
    %2130 = vmatprep.subr.mxu0 0.0
    %2131 = vmatpush1.msra.mxu0 0.0
    %2132 = vmatprep.subr.mxu0 0.0
    %2133 = vmatpush1.msra.mxu0 0.0
    %2134 = vmatprep.subr.mxu0 0.0
    %2135 = vmatpush1.msra.mxu0 0.0
    %2136 = vmatprep.subr.mxu0 0.0
    %2137 = vmatpush1.msra.mxu0 0.0
    %2138 = vmatprep.subr.mxu0 0.0
    %2139 = vmatpush1.msra.mxu0 0.0
    %2140 = vmatprep.subr.mxu0 0.0
    %2141 = vmatpush1.msra.mxu0 0.0
    %2142 = vmatprep.subr.mxu0 0.0
    %2143 = vmatpush1.msra.mxu0 0.0
    %2144 = vmatprep.subr.mxu0 0.0
    %2145 = vmatpush1.msra.mxu0 0.0
    %2146 = vmatprep.subr.mxu0 0.0
    %2147 = vmatpush1.msra.mxu0 0.0
    %2148 = vmatprep.subr.mxu0 0.0
    %2149 = vmatpush1.msra.mxu0 0.0
    %2150 = vmatprep.subr.mxu0 0.0
    %2151 = vmatpush1.msra.mxu0 0.0
    %2152 = vmatprep.subr.mxu0 0.0
    %2153 = vmatpush1.msra.mxu0 0.0
    %2154 = vmatprep.subr.mxu0 0.0
    %2155 = vmatpush1.msra.mxu0 0.0
    %2156 = vmatprep.subr.mxu0 0.0
    %2157 = vmatpush1.msra.mxu0 %v2113
    %2158 = vmatprep.subr.mxu0 0.0
    %2159 = vmatpush2.msra.mxu0 0.0
    %2160 = vmatprep.subr.mxu0 0.0
    %2161 = vmatpush2.msra.mxu0 0.0
    %2162 = vmatprep.subr.mxu0 0.0
    %2163 = vmatpush2.msra.mxu0 0.0
    %2164 = vmatprep.subr.mxu0 0.0
    %2165 = vmatpush2.msra.mxu0 0.0
    %2166 = vmatprep.subr.mxu0 0.0
    %2167 = vmatpush2.msra.mxu0 0.0
    %2168 = vmatprep.subr.mxu0 0.0
    %2169 = vmatpush2.msra.mxu0 0.0
    %2170 = vmatprep.subr.mxu0 0.0
    %2171 = vmatpush2.msra.mxu0 0.0
    %2172 = vmatprep.subr.mxu0 0.0
    %2173 = vmatpush2.msra.mxu0 0.0
    %2174 = vmatprep.subr.mxu0 0.0
    %2175 = vmatpush2.msra.mxu0 0.0
    %2176 = vmatprep.subr.mxu0 0.0
    %2177 = vmatpush2.msra.mxu0 0.0
    %2178 = vmatprep.subr.mxu0 0.0
    %2179 = vmatpush2.msra.mxu0 0.0
    %2180 = vmatprep.subr.mxu0 0.0
    %2181 = vmatpush2.msra.mxu0 0.0
    %2182 = vmatprep.subr.mxu0 0.0
    %2183 = vmatpush2.msra.mxu0 0.0
    %2184 = vmatprep.subr.mxu0 0.0
    %2185 = vmatpush2.msra.mxu0 0.0
    %2186 = vmatprep.subr.mxu0 0.0
    %2187 = vmatpush2.msra.mxu0 0.0
    %2188 = vmatprep.subr.mxu0 0.0
    %2189 = vmatpush2.msra.mxu0 0.0
    %2190 = vmatprep.mubr.f32.mxu0 0.0
    %2191 = vmatmul.mubr.f32.gmra.mxu0 %v2115
    %v2192 = vpop.f32.mrf.mxu0
    %v2193 = vadd.f32 0.0, %v2192
    %v2194 = vpop.f32.mrf.mxu0
    %2195 = vmatprep.mubr.f32.mxu0 0.0
    %2196 = vmatmul.mubr.f32.gmra.mxu0 %v2118
    %v2197 = vpop.f32.mrf.mxu0
    %v2198 = vadd.f32 0.0, %v2197
    %v2199 = vpop.f32.mrf.mxu0
    %2200 = vmatprep.mubr.f32.mxu0 0.0
    %2201 = vmatmul.mubr.f32.gmra.mxu0 %v2121
    %v2202 = vpop.f32.mrf.mxu0
    %v2203 = vadd.f32 0.0, %v2202
    %v2204 = vpop.f32.mrf.mxu0
    %2205 = vmatprep.mubr.f32.mxu0 0.0
    %2206 = vmatmul.mubr.f32.gmra.mxu0 %v2124
    %v2207 = vpop.f32.mrf.mxu0
    %v2208 = vadd.f32 0.0, %v2207
    %v2209 = vpop.f32.mrf.mxu0
    %2210 = vdwg.mxu0
    %v2211 = vadd.f32 %v1703, %v2193
    %v2212 = vadd.f32 %v1704, %v2198
    %v2213 = vadd.f32 %v1705, %v2203
    %v2214 = vadd.f32 %v1706, %v2208
    %v2215 = vld [vmem:[%s4] sm:$0x1]
    %v2217 = vlaneseq
    %v2218 = vshrl.u32 %v2217, 7
    %v2219 = vsub.s32 0, %v2218
    %v2220 = vrot.slane %v2215, %v2219
    %v2222 = vadd.f32 %v2211, %v2220
    %v2223 = vadd.f32 %v2212, %v2220
    %v2224 = vadd.f32 %v2213, %v2220
    %v2225 = vadd.f32 %v2214, %v2220
    %2226 = vst.msk [vmem:[#allocation10] sm:$0xff] %vm97, %v2222
    %2227 = vst.msk [vmem:[#allocation10 + $0x8] sm:$0xff] %vm97, %v2223
    %2228 = vst.msk [vmem:[#allocation10 + $0x10] sm:$0xff] %vm97, %v2224
    %2229 = vst.msk [vmem:[#allocation10 + $0x18] sm:$0xff] %vm97, %v2225
    %v2230 = vmul.f32 %v1936, 0.25
    %v2231 = vmul.f32 %v1937, 0.25
    %v2234 = vrot.slane %v2231, 7
    %vm2235 = vcmask 1041409
    %v2236 = vsel %vm2235, %v2234, %v2230
    %vm2238 = vcmask 123904
    %2239 = vst.msk [vmem:[#allocation11] sm:$0x3] %vm2238, %v2236
    // Predicated region
    $region42: #{tpu_custom_call.1} parent=1 // pred_check
      _
    $region43: #{tpu_custom_call.1} parent=1 // pred_check_branch
      %2241 = sbr.rel (0) target = $region45
    $region44: #{tpu_custom_call.1} parent=1 // pred_region
      %s2243 = ssub.s32 512, 512
      %2244 = vsyncadd [#allocation4], %s2243
      %s2245 = sshll.u32 [#allocation10], 4
      %s2246 = int_to_ptr.vmem [resolvable:$true] %s2245
      %2251 = dma.vmem_to_hbm [thread:$0]  %s2246, 512, %s6, [#allocation4], 128, 128, 8
    $region45: #{tpu_custom_call.1} parent=1 // pred_fallthru
      _
    // Predicated region
    $region46: #{tpu_custom_call.1} parent=1 // pred_check
      _
    $region47: #{tpu_custom_call.1} parent=1 // pred_check_branch
      %2253 = sbr.rel (0) target = $region49
    $region48: #{tpu_custom_call.1} parent=1 // pred_region
      %s2255 = ssub.s32 32, 32
      %2256 = vsyncadd [#allocation12], %s2255
      %s2258 = sshll.u32 [#allocation11], 4
      %s2259 = int_to_ptr.vmem [resolvable:$true] %s2258
      %2261 = dma.vmem_to_hbm [thread:$0]  %s2259, 32, %s7, [#allocation12]
    $region49: #{tpu_custom_call.1} parent=1 // pred_fallthru
      _
    // Predicated region
    $region50: #{tpu_custom_call.1} parent=1 // pred_check
      _
    $region51: #{tpu_custom_call.1} parent=1 // pred_check_branch
      %2263 = sbr.rel (0) target = $region53
    $region52: #{tpu_custom_call.1} parent=1 // pred_region
      %2264 = dma.done [#allocation4], 512
    $region53: #{tpu_custom_call.1} parent=1 // pred_fallthru
      _
    // Predicated region
    $region54: #{tpu_custom_call.1} parent=1 // pred_check
      _
    $region55: #{tpu_custom_call.1} parent=1 // pred_check_branch
      %2266 = sbr.rel (0) target = $region57
    $region56: #{tpu_custom_call.1} parent=1 // pred_region
      %2267 = dma.done [#allocation12], 32
    $region57: #{tpu_custom_call.1} parent=1 // pred_fallthru
      _
    %2268 = vsyncpa [#allocation3], 1
    %2269 = vsyncpa [#allocation6], 1
    %2270 = vsyncpa [#allocation9], 1
    %2271 = vsyncpa [#allocation4], 1
    %2272 = vsyncpa [#allocation12], 1

</llo_original>
